<compile_context>
chip_gen: v7x
topology: tpu7x:2x2x1
jax: 0.10.0
libtpu: 0.0.40
codegen_flags: <defaults>
</compile_context>

<pallas_src>
import math

import jax
import jax.numpy as jnp
from jax.experimental import pallas as pl
from jax.experimental.pallas import tpu as pltpu

LATENT_DIMS = 8
HIDDEN = 512
OUT = 784            # 28 * 28  (true output width, stored directly)
OUT_PAD = 896        # 7 * 128  (lane-dense padded width used for W2 / the MXU)
MAX_TB = 512         # batch tile cap (multiple of 16 sublanes for bf16 packing)


def decoder_kernel(z_ref, w1_ref, b1_ref, w2_ref, b2_ref, o_ref):
    """Fused MLP decoder tile: sigmoid(relu(z @ W1 + b1) @ W2 + b2)."""
    # Layer 1: tiny K=8 bf16 matmul on the MXU, f32 accumulation.
    z = z_ref[...].astype(jnp.bfloat16)                       # (TB, 8)
    h = jnp.dot(z, w1_ref[...],
                preferred_element_type=jnp.float32)           # (TB, 512) MXU
    h = jnp.maximum(h + b1_ref[...], 0.0)                     # bias + ReLU (VPU)
    # Layer 2: dominant 512x896 bf16 matmul, f32 accumulation.
    y = jnp.dot(h.astype(jnp.bfloat16), w2_ref[...],
                preferred_element_type=jnp.float32)           # (TB, 896) MXU
    y = y + b2_ref[...]                                       # broadcast (1, 896)
    # EUP-friendly sigmoid: exp + approximate reciprocal (both EUP slot).
    e = jnp.exp(-y)
    sig = pl.reciprocal(1.0 + e, approx=True)
    # Store only the true 784 columns: masked vst on the last 16 lanes is far
    # cheaper than a wrapper-side slice copy of the whole output.
    o_ref[...] = sig[:, :OUT]


def prepare_params(w1, b1, w2, b2):
    """One-time repack (do this once, outside the hot path):
    W1 -> bf16; W2 lane-padded to OUT_PAD columns and cast to bf16; b2 padded."""
    w1b = w1.astype(jnp.bfloat16)
    w2p = jnp.pad(w2, ((0, 0), (0, OUT_PAD - OUT))).astype(jnp.bfloat16)
    b2p = jnp.pad(b2, ((0, 0), (0, OUT_PAD - OUT)))
    return w1b, b1, w2p, b2p


def decoder_forward(z, w1b, b1, w2p, b2p):
    """z: (B, latent_dims) f32 -> (B, 1, 28, 28) f32 (matches PyTorch Decoder)."""
    B = z.shape[0]

    # Batch tile: multiple of 16, capped at MAX_TB, and sized so that when B is
    # large enough we get >=2 grid steps (so the "parallel" batch axis can be
    # sharded across both v7x TensorCores).
    half = -(-B // 2)                                  # cdiv(B, 2)
    TB = min(MAX_TB, ((half + 15) // 16) * 16)
    B_pad = ((B + TB - 1) // TB) * TB
    zp = jnp.pad(z, ((0, B_pad - B), (0, 0))) if B_pad != B else z

    flat = pl.pallas_call(
        decoder_kernel,
        out_shape=jax.ShapeDtypeStruct((B_pad, OUT), jnp.float32),
        grid=(B_pad // TB,),
        in_specs=[
            pl.BlockSpec((TB, LATENT_DIMS), lambda i: (i, 0)),       # z tile
            pl.BlockSpec((LATENT_DIMS, HIDDEN), lambda i: (0, 0)),   # W1 bf16 (resident)
            pl.BlockSpec((1, HIDDEN), lambda i: (0, 0)),             # b1 (resident)
            pl.BlockSpec((HIDDEN, OUT_PAD), lambda i: (0, 0)),       # W2 bf16 (resident)
            pl.BlockSpec((1, OUT_PAD), lambda i: (0, 0)),            # b2 (resident)
        ],
        out_specs=pl.BlockSpec((TB, OUT), lambda i: (i, 0)),
        compiler_params=pltpu.CompilerParams(
            dimension_semantics=("parallel",)),
    )(zp, w1b, b1, w2p, b2p)

    # Only the batch padding (if any) needs slicing; the 784 width is exact.
    out = flat if B_pad == B else flat[:B]
    return out.reshape(B, 1, 28, 28)


def init_params(key):
    """Deterministic init mirroring nn.Linear default (U(-1/sqrt(fan_in), ...))."""
    k1, k2, k3, k4 = jax.random.split(key, 4)
    bound1 = 1.0 / math.sqrt(LATENT_DIMS)
    bound2 = 1.0 / math.sqrt(HIDDEN)
    # stored as (in, out) so the kernel does x @ W
    w1 = jax.random.uniform(k1, (LATENT_DIMS, HIDDEN), jnp.float32,
                            minval=-bound1, maxval=bound1)
    b1 = jax.random.uniform(k2, (1, HIDDEN), jnp.float32,
                            minval=-bound1, maxval=bound1)
    w2 = jax.random.uniform(k3, (HIDDEN, OUT), jnp.float32,
                            minval=-bound2, maxval=bound2)
    b2 = jax.random.uniform(k4, (1, OUT), jnp.float32,
                            minval=-bound2, maxval=bound2)
    return w1, b1, w2, b2


if __name__ == "__main__":
    key = jax.random.PRNGKey(0)
    pkey, zkey = jax.random.split(key)
    w1, b1, w2, b2 = init_params(pkey)

    # One-time weight repack (bf16 + lane padding), hoisted off the hot path.
    w1b, b1r, w2p, b2p = prepare_params(w1, b1, w2, b2)

    B = 2
    z = jax.random.normal(zkey, (B, LATENT_DIMS), jnp.float32)

    out = decoder_forward(z, w1b, b1r, w2p, b2p)
    jax.block_until_ready(out)

    # sanity-check against plain-JAX f32 reference (bf16 matmuls + approx
    # reciprocal in the kernel -> loose tolerance)
    ref = jax.nn.sigmoid(
        jnp.maximum(z @ w1 + b1, 0.0) @ w2 + b2).reshape(B, 1, 28, 28)
    assert out.shape == (B, 1, 28, 28)
    assert jnp.allclose(out, ref, atol=2e-2, rtol=2e-2), (
        float(jnp.max(jnp.abs(out - ref))))

    print("KERNEL_OK")
</pallas_src>

<mosaic_0001>
module attributes {stable_mosaic.version = 11 : i64} {
  func.func @decoder_kernel(%arg0: i32, %arg1: memref<16x8xf32, #tpu.memory_space<vmem>>, %arg2: memref<8x512xbf16, #tpu.memory_space<vmem>>, %arg3: memref<1x512xf32, #tpu.memory_space<vmem>>, %arg4: memref<512x896xbf16, #tpu.memory_space<vmem>>, %arg5: memref<1x896xf32, #tpu.memory_space<vmem>>, %arg6: memref<16x784xf32, #tpu.memory_space<vmem>>) attributes {dimension_semantics = [#tpu.dimension_semantics<parallel>], iteration_bounds = array<i64: 1>, scalar_prefetch = 0 : i64, scratch_operands = 0 : i64, tpu.core_type = #tpu.core_type<tc>, window_params = [{transform_indices = @transform_0, window_bounds = array<i64: 16, 8>}, {pipeline_mode = #tpu.pipeline_mode<synchronous>, transform_indices = @transform_1, window_bounds = array<i64: 8, 512>}, {pipeline_mode = #tpu.pipeline_mode<synchronous>, transform_indices = @transform_2, window_bounds = array<i64: 1, 512>}, {pipeline_mode = #tpu.pipeline_mode<synchronous>, transform_indices = @transform_3, window_bounds = array<i64: 512, 896>}, {pipeline_mode = #tpu.pipeline_mode<synchronous>, transform_indices = @transform_4, window_bounds = array<i64: 1, 896>}, {transform_indices = @transform_5, window_bounds = array<i64: 16, 784>}]} {
    %c0 = arith.constant 0 : index
    %c0_0 = arith.constant 0 : index
    %0 = vector.load %arg1[%c0, %c0_0] : memref<16x8xf32, #tpu.memory_space<vmem>>, vector<16x8xf32>
    %1 = arith.truncf %0 : vector<16x8xf32> to vector<16x8xbf16>
    %c0_1 = arith.constant 0 : index
    %c0_2 = arith.constant 0 : index
    %2 = vector.load %arg2[%c0_1, %c0_2] : memref<8x512xbf16, #tpu.memory_space<vmem>>, vector<8x512xbf16>
    %cst = arith.constant dense<0.000000e+00> : vector<16x512xf32>
    %3 = tpu.matmul %1, %2, %cst {dimension_numbers = #tpu.dot_dimension_numbers<[1], [0], [0], [1], [0, 0, 1, 1], [], []>} : vector<16x8xbf16>, vector<8x512xbf16>, vector<16x512xf32> -> vector<16x512xf32>
    %c0_3 = arith.constant 0 : index
    %c0_4 = arith.constant 0 : index
    %4 = vector.load %arg3[%c0_3, %c0_4] : memref<1x512xf32, #tpu.memory_space<vmem>>, vector<1x512xf32>
    %5 = vector.broadcast %4 : vector<1x512xf32> to vector<16x512xf32>
    %6 = arith.addf %3, %5 : vector<16x512xf32>
    %cst_5 = arith.constant 0.000000e+00 : f32
    %7 = vector.broadcast %cst_5 : f32 to vector<16x512xf32>
    %8 = arith.maximumf %6, %7 : vector<16x512xf32>
    %9 = arith.truncf %8 : vector<16x512xf32> to vector<16x512xbf16>
    %c0_6 = arith.constant 0 : index
    %c0_7 = arith.constant 0 : index
    %10 = vector.load %arg4[%c0_6, %c0_7] : memref<512x896xbf16, #tpu.memory_space<vmem>>, vector<512x896xbf16>
    %cst_8 = arith.constant dense<0.000000e+00> : vector<16x896xf32>
    %11 = tpu.matmul %9, %10, %cst_8 {dimension_numbers = #tpu.dot_dimension_numbers<[1], [0], [0], [1], [0, 0, 1, 1], [], []>} : vector<16x512xbf16>, vector<512x896xbf16>, vector<16x896xf32> -> vector<16x896xf32>
    %c0_9 = arith.constant 0 : index
    %c0_10 = arith.constant 0 : index
    %12 = vector.load %arg5[%c0_9, %c0_10] : memref<1x896xf32, #tpu.memory_space<vmem>>, vector<1x896xf32>
    %13 = vector.broadcast %12 : vector<1x896xf32> to vector<16x896xf32>
    %14 = arith.addf %11, %13 : vector<16x896xf32>
    %cst_11 = arith.constant 0.000000e+00 : f32
    %15 = vector.broadcast %cst_11 : f32 to vector<16x896xf32>
    %16 = arith.subf %15, %14 : vector<16x896xf32>
    %17 = math.exp %16 : vector<16x896xf32>
    %cst_12 = arith.constant 1.000000e+00 : f32
    %18 = vector.broadcast %cst_12 : f32 to vector<16x896xf32>
    %19 = arith.addf %18, %17 : vector<16x896xf32>
    %20 = tpu.reciprocal %19 {approx = true} : vector<16x896xf32> -> vector<16x896xf32>
    %21 = vector.extract_strided_slice %20 {offsets = [0, 0], sizes = [16, 784], strides = [1, 1]} : vector<16x896xf32> to vector<16x784xf32>
    %c0_13 = arith.constant 0 : index
    %c0_14 = arith.constant 0 : index
    %22 = vector.load %arg6[%c0_13, %c0_14] : memref<16x784xf32, #tpu.memory_space<vmem>>, vector<16x784xf32>
    tpu.vector_store %arg6[%c0_13, %c0_14], %21 {strides = array<i32>} : memref<16x784xf32, #tpu.memory_space<vmem>>, vector<16x784xf32>,
    return
  }
  func.func @transform_0(%arg0: i32) -> (i32, i32) {
    %c0_i32 = arith.constant 0 : i32
    %c0_i32_0 = arith.constant 0 : i32
    return %arg0, %c0_i32 : i32, i32
  }
  func.func @transform_1(%arg0: i32) -> (i32, i32) {
    %c0_i32 = arith.constant 0 : i32
    %c0_i32_0 = arith.constant 0 : i32
    %c0_i32_1 = arith.constant 0 : i32
    return %c0_i32, %c0_i32_0 : i32, i32
  }
  func.func @transform_2(%arg0: i32) -> (i32, i32) {
    %c0_i32 = arith.constant 0 : i32
    %c0_i32_0 = arith.constant 0 : i32
    %c0_i32_1 = arith.constant 0 : i32
    return %c0_i32, %c0_i32_0 : i32, i32
  }
  func.func @transform_3(%arg0: i32) -> (i32, i32) {
    %c0_i32 = arith.constant 0 : i32
    %c0_i32_0 = arith.constant 0 : i32
    %c0_i32_1 = arith.constant 0 : i32
    return %c0_i32, %c0_i32_0 : i32, i32
  }
  func.func @transform_4(%arg0: i32) -> (i32, i32) {
    %c0_i32 = arith.constant 0 : i32
    %c0_i32_0 = arith.constant 0 : i32
    %c0_i32_1 = arith.constant 0 : i32
    return %c0_i32, %c0_i32_0 : i32, i32
  }
  func.func @transform_5(%arg0: i32) -> (i32, i32) {
    %c0_i32 = arith.constant 0 : i32
    %c0_i32_0 = arith.constant 0 : i32
    return %arg0, %c0_i32 : i32, i32
  }
}

</mosaic_0001>

<llo_original>
// kernel: tpu_custom_call.1
$region0: #{tpu_custom_call.1}
  #allocation0 [shape = 'u32[]', space=smem, size = 0x4, offset = 0x4, fixed_abs, tag = 'smem constant byte address 0x4 - core index']
  #allocation1 [shape = 'u32[144,128]{1,0:T(1,128)}', space=vmem, size = 0x12000, scoped, tag = 'internal scratch']
  %s0 = inlined_call_operand.vmem [shape: f32[16,8], index: 0, kind: input, shape index: {}]
  %s1 = inlined_call_operand.vmem [shape: bf16[8,512], index: 1, kind: input, shape index: {}]
  %s2 = inlined_call_operand.vmem [shape: f32[1,512], index: 2, kind: input, shape index: {}]
  %s3 = inlined_call_operand.hbm [shape: bf16[512,896], index: 3, kind: input, shape index: {}]
  %s4 = inlined_call_operand.vmem [shape: f32[1,896], index: 4, kind: input, shape index: {}]
  %s5 = inlined_call_operand.hbm [shape: f32[16,784], index: 5, kind: output, shape index: {}]
  %s6 = sld [smem:[#allocation0]]
  $region34: #{tpu_custom_call.1} parent=0
    _
  %s8 = ssub.s32 1, %s6
  %s9 = scalar_select 0, %s8, %s6
  $region1: #{tpu_custom_call.1} parent=0
    #allocation2 [shape = 'u8[917504]{0}', space=vmem, size = 0xe0000, scoped, tag = 'input window, operand 3, single buffered']
    #allocation3 [shape = 's32[1]{0}', space=sflag, size = 0x4, scoped, tag = 'scoped memory for tpu_custom_call.1']
    #allocation4 [shape = 's32[1]{0}', space=sflag, size = 0x4, scoped, tag = 'scoped memory for tpu_custom_call.1']
    #allocation5 [shape = 'u8[57344]{0}', space=vmem, size = 0xe000, scoped, tag = 'output window, operand 0, single buffered']
    %10 = vsyncpa [#allocation3], 0
    %11 = vsyncpa [#allocation4], 0
    // Predicated region
    $region2: #{tpu_custom_call.1} parent=1 // pred_check
      _
    $region3: #{tpu_custom_call.1} parent=1 // pred_check_branch
      %13 = sbr.rel (0) target = $region5
    $region4: #{tpu_custom_call.1} parent=1 // pred_region
      _
    $region5: #{tpu_custom_call.1} parent=1 // pred_fallthru
      _
    // Predicated region
    $region6: #{tpu_custom_call.1} parent=1 // pred_check
      _
    $region7: #{tpu_custom_call.1} parent=1 // pred_check_branch
      %15 = sbr.rel (0) target = $region9
    $region8: #{tpu_custom_call.1} parent=1 // pred_region
      _
    $region9: #{tpu_custom_call.1} parent=1 // pred_fallthru
      _
    // Predicated region
    $region10: #{tpu_custom_call.1} parent=1 // pred_check
      _
    $region11: #{tpu_custom_call.1} parent=1 // pred_check_branch
      %17 = sbr.rel (0) target = $region13
    $region12: #{tpu_custom_call.1} parent=1 // pred_region
      _
    $region13: #{tpu_custom_call.1} parent=1 // pred_fallthru
      _
    // Predicated region
    $region14: #{tpu_custom_call.1} parent=1 // pred_check
      _
    $region15: #{tpu_custom_call.1} parent=1 // pred_check_branch
      %19 = sbr.rel (0) target = $region17
    $region16: #{tpu_custom_call.1} parent=1 // pred_region
      %s21 = ssub.s32 28672, 28672
      %22 = vsyncadd [#allocation3], %s21
      %s23 = sshll.u32 [#allocation2], 4
      %s24 = int_to_ptr.vmem [resolvable:$true] %s23
      %29 = dma.hbm_to_vmem [thread:$0]  %s3, 28672, %s24, [#allocation3], 448, 448, 28
    $region17: #{tpu_custom_call.1} parent=1 // pred_fallthru
      _
    // Predicated region
    $region18: #{tpu_custom_call.1} parent=1 // pred_check
      _
    $region19: #{tpu_custom_call.1} parent=1 // pred_check_branch
      %31 = sbr.rel (0) target = $region21
    $region20: #{tpu_custom_call.1} parent=1 // pred_region
      _
    $region21: #{tpu_custom_call.1} parent=1 // pred_fallthru
      _
    // Predicated region
    $region22: #{tpu_custom_call.1} parent=1 // pred_check
      _
    $region23: #{tpu_custom_call.1} parent=1 // pred_check_branch
      %33 = sbr.rel (0) target = $region25
    $region24: #{tpu_custom_call.1} parent=1 // pred_region
      %34 = dma.done [#allocation3], 28672
    $region25: #{tpu_custom_call.1} parent=1 // pred_fallthru
      _
    %v36 = vld [vmem:[%s0] sm:$0xff]
    %v37 = vld [vmem:[%s0 + $0x8] sm:$0xff]
    %v38 = vpack.c.bf16 %v37, %v36
    %v39 = vld [vmem:[%s1] sm:$0xff]
    %v40 = vld [vmem:[%s1 + $0x8] sm:$0xff]
    %v41 = vld [vmem:[%s2] sm:$0xf]
    %v43 = vlaneseq
    %v44 = vshrl.u32 %v43, 7
    %v45 = vsub.s32 0, %v44
    %v46 = vrot.slane %v41, %v45
    %v47 = vlaneseq
    %v48 = vshrl.u32 %v47, 7
    %v49 = vsub.s32 1, %v48
    %v50 = vrot.slane %v41, %v49
    %v51 = vlaneseq
    %v52 = vshrl.u32 %v51, 7
    %v53 = vsub.s32 2, %v52
    %v54 = vrot.slane %v41, %v53
    %v55 = vlaneseq
    %v56 = vshrl.u32 %v55, 7
    %v57 = vsub.s32 3, %v56
    %v58 = vrot.slane %v41, %v57
    %v65 = vunpack.c.l.b16 %v39
    %v66 = vunpack.c.h.b16 %v39
    %v67 = vunpack.c.l.b16 %v40
    %v68 = vunpack.c.h.b16 %v40
    %v69 = vpack.c.b16 %v65, %v65
    %v70 = vpack.c.b16 %v66, %v66
    %v71 = vpack.c.b16 %v67, %v67
    %v72 = vpack.c.b16 %v68, %v68
    %vm73 = vcmask 64512
    %v75 = vsel %vm73, %v38, 0
    %vm77 = vcmask 1043456
    %v79 = vsel %vm77, %v69, 0
    %v82 = vsel %vm77, %v70, 0
    %v85 = vsel %vm77, %v71, 0
    %v88 = vsel %vm77, %v72, 0
    %90 = vmatprep.subr.bf16.mxu0 %v82
    %91 = vmatpush1.bf16.msra.mxu0 %v79
    %92 = vmatprep.subr.bf16.mxu0 0
    %93 = vmatpush1.bf16.msra.mxu0 0
    %94 = vmatprep.subr.bf16.mxu0 0
    %95 = vmatpush1.bf16.msra.mxu0 0
    %96 = vmatprep.subr.bf16.mxu0 0
    %97 = vmatpush1.bf16.msra.mxu0 0
    %98 = vmatprep.subr.bf16.mxu0 0
    %99 = vmatpush1.bf16.msra.mxu0 0
    %100 = vmatprep.subr.bf16.mxu0 0
    %101 = vmatpush1.bf16.msra.mxu0 0
    %102 = vmatprep.subr.bf16.mxu0 0
    %103 = vmatpush1.bf16.msra.mxu0 0
    %104 = vmatprep.subr.bf16.mxu0 0
    %105 = vmatpush1.bf16.msra.mxu0 0
    %106 = vmatprep.subr.bf16.mxu0 0
    %107 = vmatpush1.bf16.msra.mxu0 0
    %108 = vmatprep.subr.bf16.mxu0 0
    %109 = vmatpush1.bf16.msra.mxu0 0
    %110 = vmatprep.subr.bf16.mxu0 0
    %111 = vmatpush1.bf16.msra.mxu0 0
    %112 = vmatprep.subr.bf16.mxu0 0
    %113 = vmatpush1.bf16.msra.mxu0 0
    %114 = vmatprep.subr.bf16.mxu0 0
    %115 = vmatpush1.bf16.msra.mxu0 0
    %116 = vmatprep.subr.bf16.mxu0 0
    %117 = vmatpush1.bf16.msra.mxu0 0
    %118 = vmatprep.subr.bf16.mxu0 0
    %119 = vmatpush1.bf16.msra.mxu0 0
    %120 = vmatprep.subr.bf16.mxu0 0
    %121 = vmatpush1.bf16.msra.mxu0 0
    %122 = vmatprep.mubr.bf16.mxu0 0
    %123 = vmatmul.mubr.bf16.gmra.mrb[0].mxu0 %v75
    %v124 = vpop.f32.mrb[0].mxu0
    %v125 = vadd.f32 %v46, %v124
    %v126 = vpop.f32.mrb[0].mxu0
    %v127 = vadd.f32 %v50, %v126
    %v128 = vpop.f32.mrb[0].mxu0
    %v129 = vadd.f32 %v46, %v128
    %v130 = vpop.f32.mrb[0].mxu0
    %v131 = vadd.f32 %v50, %v130
    %132 = vdwg.mxu0
    %133 = vmatprep.subr.bf16.mxu0 %v88
    %134 = vmatpush1.bf16.msra.mxu0 %v85
    %135 = vmatprep.subr.bf16.mxu0 0
    %136 = vmatpush1.bf16.msra.mxu0 0
    %137 = vmatprep.subr.bf16.mxu0 0
    %138 = vmatpush1.bf16.msra.mxu0 0
    %139 = vmatprep.subr.bf16.mxu0 0
    %140 = vmatpush1.bf16.msra.mxu0 0
    %141 = vmatprep.subr.bf16.mxu0 0
    %142 = vmatpush1.bf16.msra.mxu0 0
    %143 = vmatprep.subr.bf16.mxu0 0
    %144 = vmatpush1.bf16.msra.mxu0 0
    %145 = vmatprep.subr.bf16.mxu0 0
    %146 = vmatpush1.bf16.msra.mxu0 0
    %147 = vmatprep.subr.bf16.mxu0 0
    %148 = vmatpush1.bf16.msra.mxu0 0
    %149 = vmatprep.subr.bf16.mxu0 0
    %150 = vmatpush1.bf16.msra.mxu0 0
    %151 = vmatprep.subr.bf16.mxu0 0
    %152 = vmatpush1.bf16.msra.mxu0 0
    %153 = vmatprep.subr.bf16.mxu0 0
    %154 = vmatpush1.bf16.msra.mxu0 0
    %155 = vmatprep.subr.bf16.mxu0 0
    %156 = vmatpush1.bf16.msra.mxu0 0
    %157 = vmatprep.subr.bf16.mxu0 0
    %158 = vmatpush1.bf16.msra.mxu0 0
    %159 = vmatprep.subr.bf16.mxu0 0
    %160 = vmatpush1.bf16.msra.mxu0 0
    %161 = vmatprep.subr.bf16.mxu0 0
    %162 = vmatpush1.bf16.msra.mxu0 0
    %163 = vmatprep.subr.bf16.mxu0 0
    %164 = vmatpush1.bf16.msra.mxu0 0
    %165 = vmatprep.mubr.bf16.mxu0 0
    %166 = vmatmul.mubr.bf16.gmra.mrb[0].mxu0 %v75
    %v167 = vpop.f32.mrb[0].mxu0
    %v168 = vadd.f32 %v54, %v167
    %v169 = vpop.f32.mrb[0].mxu0
    %v170 = vadd.f32 %v58, %v169
    %v171 = vpop.f32.mrb[0].mxu0
    %v172 = vadd.f32 %v54, %v171
    %v173 = vpop.f32.mrb[0].mxu0
    %v174 = vadd.f32 %v58, %v173
    %175 = vdwg.mxu0
    %v176 = vmax.f32 %v125, 0.0
    %v177 = vmax.f32 %v127, 0.0
    %v178 = vmax.f32 %v168, 0.0
    %v179 = vmax.f32 %v170, 0.0
    %v180 = vmax.f32 %v129, 0.0
    %v181 = vmax.f32 %v131, 0.0
    %v182 = vmax.f32 %v172, 0.0
    %v183 = vmax.f32 %v174, 0.0
    %v184 = vpack.c.bf16 %v180, %v176
    %v185 = vpack.c.bf16 %v181, %v177
    %v186 = vpack.c.bf16 %v182, %v178
    %v187 = vpack.c.bf16 %v183, %v179
    %v188 = vld [vmem:[#allocation2] sm:$0xff]
    %v189 = vld [vmem:[#allocation2 + $0x8] sm:$0xff]
    %v190 = vld [vmem:[#allocation2 + $0x10] sm:$0xff]
    %v191 = vld [vmem:[#allocation2 + $0x18] sm:$0xf]
    %v192 = vld [vmem:[#allocation2 + $0x1c] sm:$0xff]
    %v193 = vld [vmem:[#allocation2 + $0x24] sm:$0xff]
    %v194 = vld [vmem:[#allocation2 + $0x2c] sm:$0xff]
    %v195 = vld [vmem:[#allocation2 + $0x34] sm:$0xf]
    %v196 = vld [vmem:[#allocation2 + $0x38] sm:$0xff]
    %v197 = vld [vmem:[#allocation2 + $0x40] sm:$0xff]
    %v198 = vld [vmem:[#allocation2 + $0x48] sm:$0xff]
    %v199 = vld [vmem:[#allocation2 + $0x50] sm:$0xf]
    %v200 = vld [vmem:[#allocation2 + $0x54] sm:$0xff]
    %v201 = vld [vmem:[#allocation2 + $0x5c] sm:$0xff]
    %v202 = vld [vmem:[#allocation2 + $0x64] sm:$0xff]
    %v203 = vld [vmem:[#allocation2 + $0x6c] sm:$0xf]
    %v204 = vld [vmem:[#allocation2 + $0x70] sm:$0xff]
    %v205 = vld [vmem:[#allocation2 + $0x78] sm:$0xff]
    %v206 = vld [vmem:[#allocation2 + $0x80] sm:$0xff]
    %v207 = vld [vmem:[#allocation2 + $0x88] sm:$0xf]
    %v208 = vld [vmem:[#allocation2 + $0x8c] sm:$0xff]
    %v209 = vld [vmem:[#allocation2 + $0x94] sm:$0xff]
    %v210 = vld [vmem:[#allocation2 + $0x9c] sm:$0xff]
    %v211 = vld [vmem:[#allocation2 + $0xa4] sm:$0xf]
    %v212 = vld [vmem:[#allocation2 + $0xa8] sm:$0xff]
    %v213 = vld [vmem:[#allocation2 + $0xb0] sm:$0xff]
    %v214 = vld [vmem:[#allocation2 + $0xb8] sm:$0xff]
    %v215 = vld [vmem:[#allocation2 + $0xc0] sm:$0xf]
    %v216 = vld [vmem:[#allocation2 + $0xc4] sm:$0xff]
    %v217 = vld [vmem:[#allocation2 + $0xcc] sm:$0xff]
    %v218 = vld [vmem:[#allocation2 + $0xd4] sm:$0xff]
    %v219 = vld [vmem:[#allocation2 + $0xdc] sm:$0xf]
    %v220 = vld [vmem:[#allocation2 + $0xe0] sm:$0xff]
    %v221 = vld [vmem:[#allocation2 + $0xe8] sm:$0xff]
    %v222 = vld [vmem:[#allocation2 + $0xf0] sm:$0xff]
    %v223 = vld [vmem:[#allocation2 + $0xf8] sm:$0xf]
    %v224 = vld [vmem:[#allocation2 + $0xfc] sm:$0xff]
    %v225 = vld [vmem:[#allocation2 + $0x104] sm:$0xff]
    %v226 = vld [vmem:[#allocation2 + $0x10c] sm:$0xff]
    %v227 = vld [vmem:[#allocation2 + $0x114] sm:$0xf]
    %v228 = vld [vmem:[#allocation2 + $0x118] sm:$0xff]
    %v229 = vld [vmem:[#allocation2 + $0x120] sm:$0xff]
    %v230 = vld [vmem:[#allocation2 + $0x128] sm:$0xff]
    %v231 = vld [vmem:[#allocation2 + $0x130] sm:$0xf]
    %v232 = vld [vmem:[#allocation2 + $0x134] sm:$0xff]
    %v233 = vld [vmem:[#allocation2 + $0x13c] sm:$0xff]
    %v234 = vld [vmem:[#allocation2 + $0x144] sm:$0xff]
    %v235 = vld [vmem:[#allocation2 + $0x14c] sm:$0xf]
    %v236 = vld [vmem:[#allocation2 + $0x150] sm:$0xff]
    %v237 = vld [vmem:[#allocation2 + $0x158] sm:$0xff]
    %v238 = vld [vmem:[#allocation2 + $0x160] sm:$0xff]
    %v239 = vld [vmem:[#allocation2 + $0x168] sm:$0xf]
    %v240 = vld [vmem:[#allocation2 + $0x16c] sm:$0xff]
    %v241 = vld [vmem:[#allocation2 + $0x174] sm:$0xff]
    %v242 = vld [vmem:[#allocation2 + $0x17c] sm:$0xff]
    %v243 = vld [vmem:[#allocation2 + $0x184] sm:$0xf]
    %v244 = vld [vmem:[#allocation2 + $0x188] sm:$0xff]
    %v245 = vld [vmem:[#allocation2 + $0x190] sm:$0xff]
    %v246 = vld [vmem:[#allocation2 + $0x198] sm:$0xff]
    %v247 = vld [vmem:[#allocation2 + $0x1a0] sm:$0xf]
    %v248 = vld [vmem:[#allocation2 + $0x1a4] sm:$0xff]
    %v249 = vld [vmem:[#allocation2 + $0x1ac] sm:$0xff]
    %v250 = vld [vmem:[#allocation2 + $0x1b4] sm:$0xff]
    %v251 = vld [vmem:[#allocation2 + $0x1bc] sm:$0xf]
    %v252 = vld [vmem:[#allocation2 + $0x1c0] sm:$0xff]
    %v253 = vld [vmem:[#allocation2 + $0x1c8] sm:$0xff]
    %v254 = vld [vmem:[#allocation2 + $0x1d0] sm:$0xff]
    %v255 = vld [vmem:[#allocation2 + $0x1d8] sm:$0xf]
    %v256 = vld [vmem:[#allocation2 + $0x1dc] sm:$0xff]
    %v257 = vld [vmem:[#allocation2 + $0x1e4] sm:$0xff]
    %v258 = vld [vmem:[#allocation2 + $0x1ec] sm:$0xff]
    %v259 = vld [vmem:[#allocation2 + $0x1f4] sm:$0xf]
    %v260 = vld [vmem:[#allocation2 + $0x1f8] sm:$0xff]
    %v261 = vld [vmem:[#allocation2 + $0x200] sm:$0xff]
    %v262 = vld [vmem:[#allocation2 + $0x208] sm:$0xff]
    %v263 = vld [vmem:[#allocation2 + $0x210] sm:$0xf]
    %v264 = vld [vmem:[#allocation2 + $0x214] sm:$0xff]
    %v265 = vld [vmem:[#allocation2 + $0x21c] sm:$0xff]
    %v266 = vld [vmem:[#allocation2 + $0x224] sm:$0xff]
    %v267 = vld [vmem:[#allocation2 + $0x22c] sm:$0xf]
    %v268 = vld [vmem:[#allocation2 + $0x230] sm:$0xff]
    %v269 = vld [vmem:[#allocation2 + $0x238] sm:$0xff]
    %v270 = vld [vmem:[#allocation2 + $0x240] sm:$0xff]
    %v271 = vld [vmem:[#allocation2 + $0x248] sm:$0xf]
    %v272 = vld [vmem:[#allocation2 + $0x24c] sm:$0xff]
    %v273 = vld [vmem:[#allocation2 + $0x254] sm:$0xff]
    %v274 = vld [vmem:[#allocation2 + $0x25c] sm:$0xff]
    %v275 = vld [vmem:[#allocation2 + $0x264] sm:$0xf]
    %v276 = vld [vmem:[#allocation2 + $0x268] sm:$0xff]
    %v277 = vld [vmem:[#allocation2 + $0x270] sm:$0xff]
    %v278 = vld [vmem:[#allocation2 + $0x278] sm:$0xff]
    %v279 = vld [vmem:[#allocation2 + $0x280] sm:$0xf]
    %v280 = vld [vmem:[#allocation2 + $0x284] sm:$0xff]
    %v281 = vld [vmem:[#allocation2 + $0x28c] sm:$0xff]
    %v282 = vld [vmem:[#allocation2 + $0x294] sm:$0xff]
    %v283 = vld [vmem:[#allocation2 + $0x29c] sm:$0xf]
    %v284 = vld [vmem:[#allocation2 + $0x2a0] sm:$0xff]
    %v285 = vld [vmem:[#allocation2 + $0x2a8] sm:$0xff]
    %v286 = vld [vmem:[#allocation2 + $0x2b0] sm:$0xff]
    %v287 = vld [vmem:[#allocation2 + $0x2b8] sm:$0xf]
    %v288 = vld [vmem:[#allocation2 + $0x2bc] sm:$0xff]
    %v289 = vld [vmem:[#allocation2 + $0x2c4] sm:$0xff]
    %v290 = vld [vmem:[#allocation2 + $0x2cc] sm:$0xff]
    %v291 = vld [vmem:[#allocation2 + $0x2d4] sm:$0xf]
    %v292 = vld [vmem:[#allocation2 + $0x2d8] sm:$0xff]
    %v293 = vld [vmem:[#allocation2 + $0x2e0] sm:$0xff]
    %v294 = vld [vmem:[#allocation2 + $0x2e8] sm:$0xff]
    %v295 = vld [vmem:[#allocation2 + $0x2f0] sm:$0xf]
    %v296 = vld [vmem:[#allocation2 + $0x2f4] sm:$0xff]
    %v297 = vld [vmem:[#allocation2 + $0x2fc] sm:$0xff]
    %v298 = vld [vmem:[#allocation2 + $0x304] sm:$0xff]
    %v299 = vld [vmem:[#allocation2 + $0x30c] sm:$0xf]
    %v300 = vld [vmem:[#allocation2 + $0x310] sm:$0xff]
    %v301 = vld [vmem:[#allocation2 + $0x318] sm:$0xff]
    %v302 = vld [vmem:[#allocation2 + $0x320] sm:$0xff]
    %v303 = vld [vmem:[#allocation2 + $0x328] sm:$0xf]
    %v304 = vld [vmem:[#allocation2 + $0x32c] sm:$0xff]
    %v305 = vld [vmem:[#allocation2 + $0x334] sm:$0xff]
    %v306 = vld [vmem:[#allocation2 + $0x33c] sm:$0xff]
    %v307 = vld [vmem:[#allocation2 + $0x344] sm:$0xf]
    %v308 = vld [vmem:[#allocation2 + $0x348] sm:$0xff]
    %v309 = vld [vmem:[#allocation2 + $0x350] sm:$0xff]
    %v310 = vld [vmem:[#allocation2 + $0x358] sm:$0xff]
    %v311 = vld [vmem:[#allocation2 + $0x360] sm:$0xf]
    %v312 = vld [vmem:[#allocation2 + $0x364] sm:$0xff]
    %v313 = vld [vmem:[#allocation2 + $0x36c] sm:$0xff]
    %v314 = vld [vmem:[#allocation2 + $0x374] sm:$0xff]
    %v315 = vld [vmem:[#allocation2 + $0x37c] sm:$0xf]
    %v316 = vld [vmem:[#allocation2 + $0x380] sm:$0xff]
    %v317 = vld [vmem:[#allocation2 + $0x388] sm:$0xff]
    %v318 = vld [vmem:[#allocation2 + $0x390] sm:$0xff]
    %v319 = vld [vmem:[#allocation2 + $0x398] sm:$0xf]
    %v320 = vld [vmem:[#allocation2 + $0x39c] sm:$0xff]
    %v321 = vld [vmem:[#allocation2 + $0x3a4] sm:$0xff]
    %v322 = vld [vmem:[#allocation2 + $0x3ac] sm:$0xff]
    %v323 = vld [vmem:[#allocation2 + $0x3b4] sm:$0xf]
    %v324 = vld [vmem:[#allocation2 + $0x3b8] sm:$0xff]
    %v325 = vld [vmem:[#allocation2 + $0x3c0] sm:$0xff]
    %v326 = vld [vmem:[#allocation2 + $0x3c8] sm:$0xff]
    %v327 = vld [vmem:[#allocation2 + $0x3d0] sm:$0xf]
    %v328 = vld [vmem:[#allocation2 + $0x3d4] sm:$0xff]
    %v329 = vld [vmem:[#allocation2 + $0x3dc] sm:$0xff]
    %v330 = vld [vmem:[#allocation2 + $0x3e4] sm:$0xff]
    %v331 = vld [vmem:[#allocation2 + $0x3ec] sm:$0xf]
    %v332 = vld [vmem:[#allocation2 + $0x3f0] sm:$0xff]
    %v333 = vld [vmem:[#allocation2 + $0x3f8] sm:$0xff]
    %v334 = vld [vmem:[#allocation2 + $0x400] sm:$0xff]
    %v335 = vld [vmem:[#allocation2 + $0x408] sm:$0xf]
    %v336 = vld [vmem:[#allocation2 + $0x40c] sm:$0xff]
    %v337 = vld [vmem:[#allocation2 + $0x414] sm:$0xff]
    %v338 = vld [vmem:[#allocation2 + $0x41c] sm:$0xff]
    %v339 = vld [vmem:[#allocation2 + $0x424] sm:$0xf]
    %v340 = vld [vmem:[#allocation2 + $0x428] sm:$0xff]
    %v341 = vld [vmem:[#allocation2 + $0x430] sm:$0xff]
    %v342 = vld [vmem:[#allocation2 + $0x438] sm:$0xff]
    %v343 = vld [vmem:[#allocation2 + $0x440] sm:$0xf]
    %v344 = vld [vmem:[#allocation2 + $0x444] sm:$0xff]
    %v345 = vld [vmem:[#allocation2 + $0x44c] sm:$0xff]
    %v346 = vld [vmem:[#allocation2 + $0x454] sm:$0xff]
    %v347 = vld [vmem:[#allocation2 + $0x45c] sm:$0xf]
    %v348 = vld [vmem:[#allocation2 + $0x460] sm:$0xff]
    %v349 = vld [vmem:[#allocation2 + $0x468] sm:$0xff]
    %v350 = vld [vmem:[#allocation2 + $0x470] sm:$0xff]
    %v351 = vld [vmem:[#allocation2 + $0x478] sm:$0xf]
    %v352 = vld [vmem:[#allocation2 + $0x47c] sm:$0xff]
    %v353 = vld [vmem:[#allocation2 + $0x484] sm:$0xff]
    %v354 = vld [vmem:[#allocation2 + $0x48c] sm:$0xff]
    %v355 = vld [vmem:[#allocation2 + $0x494] sm:$0xf]
    %v356 = vld [vmem:[#allocation2 + $0x498] sm:$0xff]
    %v357 = vld [vmem:[#allocation2 + $0x4a0] sm:$0xff]
    %v358 = vld [vmem:[#allocation2 + $0x4a8] sm:$0xff]
    %v359 = vld [vmem:[#allocation2 + $0x4b0] sm:$0xf]
    %v360 = vld [vmem:[#allocation2 + $0x4b4] sm:$0xff]
    %v361 = vld [vmem:[#allocation2 + $0x4bc] sm:$0xff]
    %v362 = vld [vmem:[#allocation2 + $0x4c4] sm:$0xff]
    %v363 = vld [vmem:[#allocation2 + $0x4cc] sm:$0xf]
    %v364 = vld [vmem:[#allocation2 + $0x4d0] sm:$0xff]
    %v365 = vld [vmem:[#allocation2 + $0x4d8] sm:$0xff]
    %v366 = vld [vmem:[#allocation2 + $0x4e0] sm:$0xff]
    %v367 = vld [vmem:[#allocation2 + $0x4e8] sm:$0xf]
    %v368 = vld [vmem:[#allocation2 + $0x4ec] sm:$0xff]
    %v369 = vld [vmem:[#allocation2 + $0x4f4] sm:$0xff]
    %v370 = vld [vmem:[#allocation2 + $0x4fc] sm:$0xff]
    %v371 = vld [vmem:[#allocation2 + $0x504] sm:$0xf]
    %v372 = vld [vmem:[#allocation2 + $0x508] sm:$0xff]
    %v373 = vld [vmem:[#allocation2 + $0x510] sm:$0xff]
    %v374 = vld [vmem:[#allocation2 + $0x518] sm:$0xff]
    %v375 = vld [vmem:[#allocation2 + $0x520] sm:$0xf]
    %v376 = vld [vmem:[#allocation2 + $0x524] sm:$0xff]
    %v377 = vld [vmem:[#allocation2 + $0x52c] sm:$0xff]
    %v378 = vld [vmem:[#allocation2 + $0x534] sm:$0xff]
    %v379 = vld [vmem:[#allocation2 + $0x53c] sm:$0xf]
    %v380 = vld [vmem:[#allocation2 + $0x540] sm:$0xff]
    %v381 = vld [vmem:[#allocation2 + $0x548] sm:$0xff]
    %v382 = vld [vmem:[#allocation2 + $0x550] sm:$0xff]
    %v383 = vld [vmem:[#allocation2 + $0x558] sm:$0xf]
    %v384 = vld [vmem:[#allocation2 + $0x55c] sm:$0xff]
    %v385 = vld [vmem:[#allocation2 + $0x564] sm:$0xff]
    %v386 = vld [vmem:[#allocation2 + $0x56c] sm:$0xff]
    %v387 = vld [vmem:[#allocation2 + $0x574] sm:$0xf]
    %v388 = vld [vmem:[#allocation2 + $0x578] sm:$0xff]
    %v389 = vld [vmem:[#allocation2 + $0x580] sm:$0xff]
    %v390 = vld [vmem:[#allocation2 + $0x588] sm:$0xff]
    %v391 = vld [vmem:[#allocation2 + $0x590] sm:$0xf]
    %v392 = vld [vmem:[#allocation2 + $0x594] sm:$0xff]
    %v393 = vld [vmem:[#allocation2 + $0x59c] sm:$0xff]
    %v394 = vld [vmem:[#allocation2 + $0x5a4] sm:$0xff]
    %v395 = vld [vmem:[#allocation2 + $0x5ac] sm:$0xf]
    %v396 = vld [vmem:[#allocation2 + $0x5b0] sm:$0xff]
    %v397 = vld [vmem:[#allocation2 + $0x5b8] sm:$0xff]
    %v398 = vld [vmem:[#allocation2 + $0x5c0] sm:$0xff]
    %v399 = vld [vmem:[#allocation2 + $0x5c8] sm:$0xf]
    %v400 = vld [vmem:[#allocation2 + $0x5cc] sm:$0xff]
    %v401 = vld [vmem:[#allocation2 + $0x5d4] sm:$0xff]
    %v402 = vld [vmem:[#allocation2 + $0x5dc] sm:$0xff]
    %v403 = vld [vmem:[#allocation2 + $0x5e4] sm:$0xf]
    %v404 = vld [vmem:[#allocation2 + $0x5e8] sm:$0xff]
    %v405 = vld [vmem:[#allocation2 + $0x5f0] sm:$0xff]
    %v406 = vld [vmem:[#allocation2 + $0x5f8] sm:$0xff]
    %v407 = vld [vmem:[#allocation2 + $0x600] sm:$0xf]
    %v408 = vld [vmem:[#allocation2 + $0x604] sm:$0xff]
    %v409 = vld [vmem:[#allocation2 + $0x60c] sm:$0xff]
    %v410 = vld [vmem:[#allocation2 + $0x614] sm:$0xff]
    %v411 = vld [vmem:[#allocation2 + $0x61c] sm:$0xf]
    %v412 = vld [vmem:[#allocation2 + $0x620] sm:$0xff]
    %v413 = vld [vmem:[#allocation2 + $0x628] sm:$0xff]
    %v414 = vld [vmem:[#allocation2 + $0x630] sm:$0xff]
    %v415 = vld [vmem:[#allocation2 + $0x638] sm:$0xf]
    %v416 = vld [vmem:[#allocation2 + $0x63c] sm:$0xff]
    %v417 = vld [vmem:[#allocation2 + $0x644] sm:$0xff]
    %v418 = vld [vmem:[#allocation2 + $0x64c] sm:$0xff]
    %v419 = vld [vmem:[#allocation2 + $0x654] sm:$0xf]
    %v420 = vld [vmem:[#allocation2 + $0x658] sm:$0xff]
    %v421 = vld [vmem:[#allocation2 + $0x660] sm:$0xff]
    %v422 = vld [vmem:[#allocation2 + $0x668] sm:$0xff]
    %v423 = vld [vmem:[#allocation2 + $0x670] sm:$0xf]
    %v424 = vld [vmem:[#allocation2 + $0x674] sm:$0xff]
    %v425 = vld [vmem:[#allocation2 + $0x67c] sm:$0xff]
    %v426 = vld [vmem:[#allocation2 + $0x684] sm:$0xff]
    %v427 = vld [vmem:[#allocation2 + $0x68c] sm:$0xf]
    %v428 = vld [vmem:[#allocation2 + $0x690] sm:$0xff]
    %v429 = vld [vmem:[#allocation2 + $0x698] sm:$0xff]
    %v430 = vld [vmem:[#allocation2 + $0x6a0] sm:$0xff]
    %v431 = vld [vmem:[#allocation2 + $0x6a8] sm:$0xf]
    %v432 = vld [vmem:[#allocation2 + $0x6ac] sm:$0xff]
    %v433 = vld [vmem:[#allocation2 + $0x6b4] sm:$0xff]
    %v434 = vld [vmem:[#allocation2 + $0x6bc] sm:$0xff]
    %v435 = vld [vmem:[#allocation2 + $0x6c4] sm:$0xf]
    %v436 = vld [vmem:[#allocation2 + $0x6c8] sm:$0xff]
    %v437 = vld [vmem:[#allocation2 + $0x6d0] sm:$0xff]
    %v438 = vld [vmem:[#allocation2 + $0x6d8] sm:$0xff]
    %v439 = vld [vmem:[#allocation2 + $0x6e0] sm:$0xf]
    %v440 = vld [vmem:[#allocation2 + $0x6e4] sm:$0xff]
    %v441 = vld [vmem:[#allocation2 + $0x6ec] sm:$0xff]
    %v442 = vld [vmem:[#allocation2 + $0x6f4] sm:$0xff]
    %v443 = vld [vmem:[#allocation2 + $0x6fc] sm:$0xf]
    %v444 = vld [vmem:[%s4] sm:$0xff]
    %v446 = vlaneseq
    %v447 = vshrl.u32 %v446, 7
    %v448 = vsub.s32 0, %v447
    %v449 = vrot.slane %v444, %v448
    %v450 = vlaneseq
    %v451 = vshrl.u32 %v450, 7
    %v452 = vsub.s32 1, %v451
    %v453 = vrot.slane %v444, %v452
    %v454 = vlaneseq
    %v455 = vshrl.u32 %v454, 7
    %v456 = vsub.s32 2, %v455
    %v457 = vrot.slane %v444, %v456
    %v458 = vlaneseq
    %v459 = vshrl.u32 %v458, 7
    %v460 = vsub.s32 3, %v459
    %v461 = vrot.slane %v444, %v460
    %v462 = vlaneseq
    %v463 = vshrl.u32 %v462, 7
    %v464 = vsub.s32 4, %v463
    %v465 = vrot.slane %v444, %v464
    %v466 = vlaneseq
    %v467 = vshrl.u32 %v466, 7
    %v468 = vsub.s32 5, %v467
    %v469 = vrot.slane %v444, %v468
    %v470 = vlaneseq
    %v471 = vshrl.u32 %v470, 7
    %v472 = vsub.s32 6, %v471
    %v473 = vrot.slane %v444, %v472
    %v737 = vunpack.c.l.b16 %v188
    %v738 = vunpack.c.h.b16 %v188
    %v739 = vunpack.c.l.b16 %v189
    %v740 = vunpack.c.h.b16 %v189
    %v741 = vunpack.c.l.b16 %v190
    %v742 = vunpack.c.h.b16 %v190
    %v743 = vunpack.c.l.b16 %v191
    %v744 = vunpack.c.l.b16 %v192
    %v745 = vunpack.c.h.b16 %v192
    %v746 = vunpack.c.l.b16 %v193
    %v747 = vunpack.c.h.b16 %v193
    %v748 = vunpack.c.l.b16 %v194
    %v749 = vunpack.c.h.b16 %v194
    %v750 = vunpack.c.l.b16 %v195
    %v751 = vunpack.c.l.b16 %v196
    %v752 = vunpack.c.h.b16 %v196
    %v753 = vunpack.c.l.b16 %v197
    %v754 = vunpack.c.h.b16 %v197
    %v755 = vunpack.c.l.b16 %v198
    %v756 = vunpack.c.h.b16 %v198
    %v757 = vunpack.c.l.b16 %v199
    %v758 = vunpack.c.l.b16 %v200
    %v759 = vunpack.c.h.b16 %v200
    %v760 = vunpack.c.l.b16 %v201
    %v761 = vunpack.c.h.b16 %v201
    %v762 = vunpack.c.l.b16 %v202
    %v763 = vunpack.c.h.b16 %v202
    %v764 = vunpack.c.l.b16 %v203
    %v765 = vunpack.c.l.b16 %v204
    %v766 = vunpack.c.h.b16 %v204
    %v767 = vunpack.c.l.b16 %v205
    %v768 = vunpack.c.h.b16 %v205
    %v769 = vunpack.c.l.b16 %v206
    %v770 = vunpack.c.h.b16 %v206
    %v771 = vunpack.c.l.b16 %v207
    %v772 = vunpack.c.l.b16 %v208
    %v773 = vunpack.c.h.b16 %v208
    %v774 = vunpack.c.l.b16 %v209
    %v775 = vunpack.c.h.b16 %v209
    %v776 = vunpack.c.l.b16 %v210
    %v777 = vunpack.c.h.b16 %v210
    %v778 = vunpack.c.l.b16 %v211
    %v779 = vunpack.c.l.b16 %v212
    %v780 = vunpack.c.h.b16 %v212
    %v781 = vunpack.c.l.b16 %v213
    %v782 = vunpack.c.h.b16 %v213
    %v783 = vunpack.c.l.b16 %v214
    %v784 = vunpack.c.h.b16 %v214
    %v785 = vunpack.c.l.b16 %v215
    %v786 = vunpack.c.l.b16 %v216
    %v787 = vunpack.c.h.b16 %v216
    %v788 = vunpack.c.l.b16 %v217
    %v789 = vunpack.c.h.b16 %v217
    %v790 = vunpack.c.l.b16 %v218
    %v791 = vunpack.c.h.b16 %v218
    %v792 = vunpack.c.l.b16 %v219
    %v793 = vunpack.c.l.b16 %v220
    %v794 = vunpack.c.h.b16 %v220
    %v795 = vunpack.c.l.b16 %v221
    %v796 = vunpack.c.h.b16 %v221
    %v797 = vunpack.c.l.b16 %v222
    %v798 = vunpack.c.h.b16 %v222
    %v799 = vunpack.c.l.b16 %v223
    %v800 = vunpack.c.l.b16 %v224
    %v801 = vunpack.c.h.b16 %v224
    %v802 = vunpack.c.l.b16 %v225
    %v803 = vunpack.c.h.b16 %v225
    %v804 = vunpack.c.l.b16 %v226
    %v805 = vunpack.c.h.b16 %v226
    %v806 = vunpack.c.l.b16 %v227
    %v807 = vunpack.c.l.b16 %v228
    %v808 = vunpack.c.h.b16 %v228
    %v809 = vunpack.c.l.b16 %v229
    %v810 = vunpack.c.h.b16 %v229
    %v811 = vunpack.c.l.b16 %v230
    %v812 = vunpack.c.h.b16 %v230
    %v813 = vunpack.c.l.b16 %v231
    %v814 = vunpack.c.l.b16 %v232
    %v815 = vunpack.c.h.b16 %v232
    %v816 = vunpack.c.l.b16 %v233
    %v817 = vunpack.c.h.b16 %v233
    %v818 = vunpack.c.l.b16 %v234
    %v819 = vunpack.c.h.b16 %v234
    %v820 = vunpack.c.l.b16 %v235
    %v821 = vunpack.c.l.b16 %v236
    %v822 = vunpack.c.h.b16 %v236
    %v823 = vunpack.c.l.b16 %v237
    %v824 = vunpack.c.h.b16 %v237
    %v825 = vunpack.c.l.b16 %v238
    %v826 = vunpack.c.h.b16 %v238
    %v827 = vunpack.c.l.b16 %v239
    %v828 = vunpack.c.l.b16 %v240
    %v829 = vunpack.c.h.b16 %v240
    %v830 = vunpack.c.l.b16 %v241
    %v831 = vunpack.c.h.b16 %v241
    %v832 = vunpack.c.l.b16 %v242
    %v833 = vunpack.c.h.b16 %v242
    %v834 = vunpack.c.l.b16 %v243
    %v835 = vunpack.c.l.b16 %v244
    %v836 = vunpack.c.h.b16 %v244
    %v837 = vunpack.c.l.b16 %v245
    %v838 = vunpack.c.h.b16 %v245
    %v839 = vunpack.c.l.b16 %v246
    %v840 = vunpack.c.h.b16 %v246
    %v841 = vunpack.c.l.b16 %v247
    %v842 = vunpack.c.l.b16 %v248
    %v843 = vunpack.c.h.b16 %v248
    %v844 = vunpack.c.l.b16 %v249
    %v845 = vunpack.c.h.b16 %v249
    %v846 = vunpack.c.l.b16 %v250
    %v847 = vunpack.c.h.b16 %v250
    %v848 = vunpack.c.l.b16 %v251
    %v849 = vunpack.c.l.b16 %v252
    %v850 = vunpack.c.h.b16 %v252
    %v851 = vunpack.c.l.b16 %v253
    %v852 = vunpack.c.h.b16 %v253
    %v853 = vunpack.c.l.b16 %v254
    %v854 = vunpack.c.h.b16 %v254
    %v855 = vunpack.c.l.b16 %v255
    %v856 = vunpack.c.l.b16 %v256
    %v857 = vunpack.c.h.b16 %v256
    %v858 = vunpack.c.l.b16 %v257
    %v859 = vunpack.c.h.b16 %v257
    %v860 = vunpack.c.l.b16 %v258
    %v861 = vunpack.c.h.b16 %v258
    %v862 = vunpack.c.l.b16 %v259
    %v863 = vunpack.c.l.b16 %v260
    %v864 = vunpack.c.h.b16 %v260
    %v865 = vunpack.c.l.b16 %v261
    %v866 = vunpack.c.h.b16 %v261
    %v867 = vunpack.c.l.b16 %v262
    %v868 = vunpack.c.h.b16 %v262
    %v869 = vunpack.c.l.b16 %v263
    %v870 = vunpack.c.l.b16 %v264
    %v871 = vunpack.c.h.b16 %v264
    %v872 = vunpack.c.l.b16 %v265
    %v873 = vunpack.c.h.b16 %v265
    %v874 = vunpack.c.l.b16 %v266
    %v875 = vunpack.c.h.b16 %v266
    %v876 = vunpack.c.l.b16 %v267
    %v877 = vunpack.c.l.b16 %v268
    %v878 = vunpack.c.h.b16 %v268
    %v879 = vunpack.c.l.b16 %v269
    %v880 = vunpack.c.h.b16 %v269
    %v881 = vunpack.c.l.b16 %v270
    %v882 = vunpack.c.h.b16 %v270
    %v883 = vunpack.c.l.b16 %v271
    %v884 = vunpack.c.l.b16 %v272
    %v885 = vunpack.c.h.b16 %v272
    %v886 = vunpack.c.l.b16 %v273
    %v887 = vunpack.c.h.b16 %v273
    %v888 = vunpack.c.l.b16 %v274
    %v889 = vunpack.c.h.b16 %v274
    %v890 = vunpack.c.l.b16 %v275
    %v891 = vunpack.c.l.b16 %v276
    %v892 = vunpack.c.h.b16 %v276
    %v893 = vunpack.c.l.b16 %v277
    %v894 = vunpack.c.h.b16 %v277
    %v895 = vunpack.c.l.b16 %v278
    %v896 = vunpack.c.h.b16 %v278
    %v897 = vunpack.c.l.b16 %v279
    %v898 = vunpack.c.l.b16 %v280
    %v899 = vunpack.c.h.b16 %v280
    %v900 = vunpack.c.l.b16 %v281
    %v901 = vunpack.c.h.b16 %v281
    %v902 = vunpack.c.l.b16 %v282
    %v903 = vunpack.c.h.b16 %v282
    %v904 = vunpack.c.l.b16 %v283
    %v905 = vunpack.c.l.b16 %v284
    %v906 = vunpack.c.h.b16 %v284
    %v907 = vunpack.c.l.b16 %v285
    %v908 = vunpack.c.h.b16 %v285
    %v909 = vunpack.c.l.b16 %v286
    %v910 = vunpack.c.h.b16 %v286
    %v911 = vunpack.c.l.b16 %v287
    %v912 = vunpack.c.l.b16 %v288
    %v913 = vunpack.c.h.b16 %v288
    %v914 = vunpack.c.l.b16 %v289
    %v915 = vunpack.c.h.b16 %v289
    %v916 = vunpack.c.l.b16 %v290
    %v917 = vunpack.c.h.b16 %v290
    %v918 = vunpack.c.l.b16 %v291
    %v919 = vunpack.c.l.b16 %v292
    %v920 = vunpack.c.h.b16 %v292
    %v921 = vunpack.c.l.b16 %v293
    %v922 = vunpack.c.h.b16 %v293
    %v923 = vunpack.c.l.b16 %v294
    %v924 = vunpack.c.h.b16 %v294
    %v925 = vunpack.c.l.b16 %v295
    %v926 = vunpack.c.l.b16 %v296
    %v927 = vunpack.c.h.b16 %v296
    %v928 = vunpack.c.l.b16 %v297
    %v929 = vunpack.c.h.b16 %v297
    %v930 = vunpack.c.l.b16 %v298
    %v931 = vunpack.c.h.b16 %v298
    %v932 = vunpack.c.l.b16 %v299
    %v933 = vunpack.c.l.b16 %v300
    %v934 = vunpack.c.h.b16 %v300
    %v935 = vunpack.c.l.b16 %v301
    %v936 = vunpack.c.h.b16 %v301
    %v937 = vunpack.c.l.b16 %v302
    %v938 = vunpack.c.h.b16 %v302
    %v939 = vunpack.c.l.b16 %v303
    %v940 = vunpack.c.l.b16 %v304
    %v941 = vunpack.c.h.b16 %v304
    %v942 = vunpack.c.l.b16 %v305
    %v943 = vunpack.c.h.b16 %v305
    %v944 = vunpack.c.l.b16 %v306
    %v945 = vunpack.c.h.b16 %v306
    %v946 = vunpack.c.l.b16 %v307
    %v947 = vunpack.c.l.b16 %v308
    %v948 = vunpack.c.h.b16 %v308
    %v949 = vunpack.c.l.b16 %v309
    %v950 = vunpack.c.h.b16 %v309
    %v951 = vunpack.c.l.b16 %v310
    %v952 = vunpack.c.h.b16 %v310
    %v953 = vunpack.c.l.b16 %v311
    %v954 = vunpack.c.l.b16 %v312
    %v955 = vunpack.c.h.b16 %v312
    %v956 = vunpack.c.l.b16 %v313
    %v957 = vunpack.c.h.b16 %v313
    %v958 = vunpack.c.l.b16 %v314
    %v959 = vunpack.c.h.b16 %v314
    %v960 = vunpack.c.l.b16 %v315
    %v961 = vunpack.c.l.b16 %v316
    %v962 = vunpack.c.h.b16 %v316
    %v963 = vunpack.c.l.b16 %v317
    %v964 = vunpack.c.h.b16 %v317
    %v965 = vunpack.c.l.b16 %v318
    %v966 = vunpack.c.h.b16 %v318
    %v967 = vunpack.c.l.b16 %v319
    %v968 = vunpack.c.l.b16 %v320
    %v969 = vunpack.c.h.b16 %v320
    %v970 = vunpack.c.l.b16 %v321
    %v971 = vunpack.c.h.b16 %v321
    %v972 = vunpack.c.l.b16 %v322
    %v973 = vunpack.c.h.b16 %v322
    %v974 = vunpack.c.l.b16 %v323
    %v975 = vunpack.c.l.b16 %v324
    %v976 = vunpack.c.h.b16 %v324
    %v977 = vunpack.c.l.b16 %v325
    %v978 = vunpack.c.h.b16 %v325
    %v979 = vunpack.c.l.b16 %v326
    %v980 = vunpack.c.h.b16 %v326
    %v981 = vunpack.c.l.b16 %v327
    %v982 = vunpack.c.l.b16 %v328
    %v983 = vunpack.c.h.b16 %v328
    %v984 = vunpack.c.l.b16 %v329
    %v985 = vunpack.c.h.b16 %v329
    %v986 = vunpack.c.l.b16 %v330
    %v987 = vunpack.c.h.b16 %v330
    %v988 = vunpack.c.l.b16 %v331
    %v989 = vunpack.c.l.b16 %v332
    %v990 = vunpack.c.h.b16 %v332
    %v991 = vunpack.c.l.b16 %v333
    %v992 = vunpack.c.h.b16 %v333
    %v993 = vunpack.c.l.b16 %v334
    %v994 = vunpack.c.h.b16 %v334
    %v995 = vunpack.c.l.b16 %v335
    %v996 = vunpack.c.l.b16 %v336
    %v997 = vunpack.c.h.b16 %v336
    %v998 = vunpack.c.l.b16 %v337
    %v999 = vunpack.c.h.b16 %v337
    %v1000 = vunpack.c.l.b16 %v338
    %v1001 = vunpack.c.h.b16 %v338
    %v1002 = vunpack.c.l.b16 %v339
    %v1003 = vunpack.c.l.b16 %v340
    %v1004 = vunpack.c.h.b16 %v340
    %v1005 = vunpack.c.l.b16 %v341
    %v1006 = vunpack.c.h.b16 %v341
    %v1007 = vunpack.c.l.b16 %v342
    %v1008 = vunpack.c.h.b16 %v342
    %v1009 = vunpack.c.l.b16 %v343
    %v1010 = vunpack.c.l.b16 %v344
    %v1011 = vunpack.c.h.b16 %v344
    %v1012 = vunpack.c.l.b16 %v345
    %v1013 = vunpack.c.h.b16 %v345
    %v1014 = vunpack.c.l.b16 %v346
    %v1015 = vunpack.c.h.b16 %v346
    %v1016 = vunpack.c.l.b16 %v347
    %v1017 = vunpack.c.l.b16 %v348
    %v1018 = vunpack.c.h.b16 %v348
    %v1019 = vunpack.c.l.b16 %v349
    %v1020 = vunpack.c.h.b16 %v349
    %v1021 = vunpack.c.l.b16 %v350
    %v1022 = vunpack.c.h.b16 %v350
    %v1023 = vunpack.c.l.b16 %v351
    %v1024 = vunpack.c.l.b16 %v352
    %v1025 = vunpack.c.h.b16 %v352
    %v1026 = vunpack.c.l.b16 %v353
    %v1027 = vunpack.c.h.b16 %v353
    %v1028 = vunpack.c.l.b16 %v354
    %v1029 = vunpack.c.h.b16 %v354
    %v1030 = vunpack.c.l.b16 %v355
    %v1031 = vunpack.c.l.b16 %v356
    %v1032 = vunpack.c.h.b16 %v356
    %v1033 = vunpack.c.l.b16 %v357
    %v1034 = vunpack.c.h.b16 %v357
    %v1035 = vunpack.c.l.b16 %v358
    %v1036 = vunpack.c.h.b16 %v358
    %v1037 = vunpack.c.l.b16 %v359
    %v1038 = vunpack.c.l.b16 %v360
    %v1039 = vunpack.c.h.b16 %v360
    %v1040 = vunpack.c.l.b16 %v361
    %v1041 = vunpack.c.h.b16 %v361
    %v1042 = vunpack.c.l.b16 %v362
    %v1043 = vunpack.c.h.b16 %v362
    %v1044 = vunpack.c.l.b16 %v363
    %v1045 = vunpack.c.l.b16 %v364
    %v1046 = vunpack.c.h.b16 %v364
    %v1047 = vunpack.c.l.b16 %v365
    %v1048 = vunpack.c.h.b16 %v365
    %v1049 = vunpack.c.l.b16 %v366
    %v1050 = vunpack.c.h.b16 %v366
    %v1051 = vunpack.c.l.b16 %v367
    %v1052 = vunpack.c.l.b16 %v368
    %v1053 = vunpack.c.h.b16 %v368
    %v1054 = vunpack.c.l.b16 %v369
    %v1055 = vunpack.c.h.b16 %v369
    %v1056 = vunpack.c.l.b16 %v370
    %v1057 = vunpack.c.h.b16 %v370
    %v1058 = vunpack.c.l.b16 %v371
    %v1059 = vunpack.c.l.b16 %v372
    %v1060 = vunpack.c.h.b16 %v372
    %v1061 = vunpack.c.l.b16 %v373
    %v1062 = vunpack.c.h.b16 %v373
    %v1063 = vunpack.c.l.b16 %v374
    %v1064 = vunpack.c.h.b16 %v374
    %v1065 = vunpack.c.l.b16 %v375
    %v1066 = vunpack.c.l.b16 %v376
    %v1067 = vunpack.c.h.b16 %v376
    %v1068 = vunpack.c.l.b16 %v377
    %v1069 = vunpack.c.h.b16 %v377
    %v1070 = vunpack.c.l.b16 %v378
    %v1071 = vunpack.c.h.b16 %v378
    %v1072 = vunpack.c.l.b16 %v379
    %v1073 = vunpack.c.l.b16 %v380
    %v1074 = vunpack.c.h.b16 %v380
    %v1075 = vunpack.c.l.b16 %v381
    %v1076 = vunpack.c.h.b16 %v381
    %v1077 = vunpack.c.l.b16 %v382
    %v1078 = vunpack.c.h.b16 %v382
    %v1079 = vunpack.c.l.b16 %v383
    %v1080 = vunpack.c.l.b16 %v384
    %v1081 = vunpack.c.h.b16 %v384
    %v1082 = vunpack.c.l.b16 %v385
    %v1083 = vunpack.c.h.b16 %v385
    %v1084 = vunpack.c.l.b16 %v386
    %v1085 = vunpack.c.h.b16 %v386
    %v1086 = vunpack.c.l.b16 %v387
    %v1087 = vunpack.c.l.b16 %v388
    %v1088 = vunpack.c.h.b16 %v388
    %v1089 = vunpack.c.l.b16 %v389
    %v1090 = vunpack.c.h.b16 %v389
    %v1091 = vunpack.c.l.b16 %v390
    %v1092 = vunpack.c.h.b16 %v390
    %v1093 = vunpack.c.l.b16 %v391
    %v1094 = vunpack.c.l.b16 %v392
    %v1095 = vunpack.c.h.b16 %v392
    %v1096 = vunpack.c.l.b16 %v393
    %v1097 = vunpack.c.h.b16 %v393
    %v1098 = vunpack.c.l.b16 %v394
    %v1099 = vunpack.c.h.b16 %v394
    %v1100 = vunpack.c.l.b16 %v395
    %v1101 = vunpack.c.l.b16 %v396
    %v1102 = vunpack.c.h.b16 %v396
    %v1103 = vunpack.c.l.b16 %v397
    %v1104 = vunpack.c.h.b16 %v397
    %v1105 = vunpack.c.l.b16 %v398
    %v1106 = vunpack.c.h.b16 %v398
    %v1107 = vunpack.c.l.b16 %v399
    %v1108 = vunpack.c.l.b16 %v400
    %v1109 = vunpack.c.h.b16 %v400
    %v1110 = vunpack.c.l.b16 %v401
    %v1111 = vunpack.c.h.b16 %v401
    %v1112 = vunpack.c.l.b16 %v402
    %v1113 = vunpack.c.h.b16 %v402
    %v1114 = vunpack.c.l.b16 %v403
    %v1115 = vunpack.c.l.b16 %v404
    %v1116 = vunpack.c.h.b16 %v404
    %v1117 = vunpack.c.l.b16 %v405
    %v1118 = vunpack.c.h.b16 %v405
    %v1119 = vunpack.c.l.b16 %v406
    %v1120 = vunpack.c.h.b16 %v406
    %v1121 = vunpack.c.l.b16 %v407
    %v1122 = vunpack.c.l.b16 %v408
    %v1123 = vunpack.c.h.b16 %v408
    %v1124 = vunpack.c.l.b16 %v409
    %v1125 = vunpack.c.h.b16 %v409
    %v1126 = vunpack.c.l.b16 %v410
    %v1127 = vunpack.c.h.b16 %v410
    %v1128 = vunpack.c.l.b16 %v411
    %v1129 = vunpack.c.l.b16 %v412
    %v1130 = vunpack.c.h.b16 %v412
    %v1131 = vunpack.c.l.b16 %v413
    %v1132 = vunpack.c.h.b16 %v413
    %v1133 = vunpack.c.l.b16 %v414
    %v1134 = vunpack.c.h.b16 %v414
    %v1135 = vunpack.c.l.b16 %v415
    %v1136 = vunpack.c.l.b16 %v416
    %v1137 = vunpack.c.h.b16 %v416
    %v1138 = vunpack.c.l.b16 %v417
    %v1139 = vunpack.c.h.b16 %v417
    %v1140 = vunpack.c.l.b16 %v418
    %v1141 = vunpack.c.h.b16 %v418
    %v1142 = vunpack.c.l.b16 %v419
    %v1143 = vunpack.c.l.b16 %v420
    %v1144 = vunpack.c.h.b16 %v420
    %v1145 = vunpack.c.l.b16 %v421
    %v1146 = vunpack.c.h.b16 %v421
    %v1147 = vunpack.c.l.b16 %v422
    %v1148 = vunpack.c.h.b16 %v422
    %v1149 = vunpack.c.l.b16 %v423
    %v1150 = vunpack.c.l.b16 %v424
    %v1151 = vunpack.c.h.b16 %v424
    %v1152 = vunpack.c.l.b16 %v425
    %v1153 = vunpack.c.h.b16 %v425
    %v1154 = vunpack.c.l.b16 %v426
    %v1155 = vunpack.c.h.b16 %v426
    %v1156 = vunpack.c.l.b16 %v427
    %v1157 = vunpack.c.l.b16 %v428
    %v1158 = vunpack.c.h.b16 %v428
    %v1159 = vunpack.c.l.b16 %v429
    %v1160 = vunpack.c.h.b16 %v429
    %v1161 = vunpack.c.l.b16 %v430
    %v1162 = vunpack.c.h.b16 %v430
    %v1163 = vunpack.c.l.b16 %v431
    %v1164 = vunpack.c.l.b16 %v432
    %v1165 = vunpack.c.h.b16 %v432
    %v1166 = vunpack.c.l.b16 %v433
    %v1167 = vunpack.c.h.b16 %v433
    %v1168 = vunpack.c.l.b16 %v434
    %v1169 = vunpack.c.h.b16 %v434
    %v1170 = vunpack.c.l.b16 %v435
    %v1171 = vunpack.c.l.b16 %v436
    %v1172 = vunpack.c.h.b16 %v436
    %v1173 = vunpack.c.l.b16 %v437
    %v1174 = vunpack.c.h.b16 %v437
    %v1175 = vunpack.c.l.b16 %v438
    %v1176 = vunpack.c.h.b16 %v438
    %v1177 = vunpack.c.l.b16 %v439
    %v1178 = vunpack.c.l.b16 %v440
    %v1179 = vunpack.c.h.b16 %v440
    %v1180 = vunpack.c.l.b16 %v441
    %v1181 = vunpack.c.h.b16 %v441
    %v1182 = vunpack.c.l.b16 %v442
    %v1183 = vunpack.c.h.b16 %v442
    %v1184 = vunpack.c.l.b16 %v443
    %v1185 = vpack.c.b16 %v744, %v737
    %v1186 = vpack.c.b16 %v745, %v738
    %v1187 = vpack.c.b16 %v746, %v739
    %v1188 = vpack.c.b16 %v747, %v740
    %v1189 = vpack.c.b16 %v748, %v741
    %v1190 = vpack.c.b16 %v749, %v742
    %v1191 = vpack.c.b16 %v750, %v743
    %v1192 = vpack.c.b16 %v758, %v751
    %v1193 = vpack.c.b16 %v759, %v752
    %v1194 = vpack.c.b16 %v760, %v753
    %v1195 = vpack.c.b16 %v761, %v754
    %v1196 = vpack.c.b16 %v762, %v755
    %v1197 = vpack.c.b16 %v763, %v756
    %v1198 = vpack.c.b16 %v764, %v757
    %v1199 = vpack.c.b16 %v772, %v765
    %v1200 = vpack.c.b16 %v773, %v766
    %v1201 = vpack.c.b16 %v774, %v767
    %v1202 = vpack.c.b16 %v775, %v768
    %v1203 = vpack.c.b16 %v776, %v769
    %v1204 = vpack.c.b16 %v777, %v770
    %v1205 = vpack.c.b16 %v778, %v771
    %v1206 = vpack.c.b16 %v786, %v779
    %v1207 = vpack.c.b16 %v787, %v780
    %v1208 = vpack.c.b16 %v788, %v781
    %v1209 = vpack.c.b16 %v789, %v782
    %v1210 = vpack.c.b16 %v790, %v783
    %v1211 = vpack.c.b16 %v791, %v784
    %v1212 = vpack.c.b16 %v792, %v785
    %v1213 = vpack.c.b16 %v800, %v793
    %v1214 = vpack.c.b16 %v801, %v794
    %v1215 = vpack.c.b16 %v802, %v795
    %v1216 = vpack.c.b16 %v803, %v796
    %v1217 = vpack.c.b16 %v804, %v797
    %v1218 = vpack.c.b16 %v805, %v798
    %v1219 = vpack.c.b16 %v806, %v799
    %v1220 = vpack.c.b16 %v814, %v807
    %v1221 = vpack.c.b16 %v815, %v808
    %v1222 = vpack.c.b16 %v816, %v809
    %v1223 = vpack.c.b16 %v817, %v810
    %v1224 = vpack.c.b16 %v818, %v811
    %v1225 = vpack.c.b16 %v819, %v812
    %v1226 = vpack.c.b16 %v820, %v813
    %v1227 = vpack.c.b16 %v828, %v821
    %v1228 = vpack.c.b16 %v829, %v822
    %v1229 = vpack.c.b16 %v830, %v823
    %v1230 = vpack.c.b16 %v831, %v824
    %v1231 = vpack.c.b16 %v832, %v825
    %v1232 = vpack.c.b16 %v833, %v826
    %v1233 = vpack.c.b16 %v834, %v827
    %v1234 = vpack.c.b16 %v842, %v835
    %v1235 = vpack.c.b16 %v843, %v836
    %v1236 = vpack.c.b16 %v844, %v837
    %v1237 = vpack.c.b16 %v845, %v838
    %v1238 = vpack.c.b16 %v846, %v839
    %v1239 = vpack.c.b16 %v847, %v840
    %v1240 = vpack.c.b16 %v848, %v841
    %v1241 = vpack.c.b16 %v856, %v849
    %v1242 = vpack.c.b16 %v857, %v850
    %v1243 = vpack.c.b16 %v858, %v851
    %v1244 = vpack.c.b16 %v859, %v852
    %v1245 = vpack.c.b16 %v860, %v853
    %v1246 = vpack.c.b16 %v861, %v854
    %v1247 = vpack.c.b16 %v862, %v855
    %v1248 = vpack.c.b16 %v870, %v863
    %v1249 = vpack.c.b16 %v871, %v864
    %v1250 = vpack.c.b16 %v872, %v865
    %v1251 = vpack.c.b16 %v873, %v866
    %v1252 = vpack.c.b16 %v874, %v867
    %v1253 = vpack.c.b16 %v875, %v868
    %v1254 = vpack.c.b16 %v876, %v869
    %v1255 = vpack.c.b16 %v884, %v877
    %v1256 = vpack.c.b16 %v885, %v878
    %v1257 = vpack.c.b16 %v886, %v879
    %v1258 = vpack.c.b16 %v887, %v880
    %v1259 = vpack.c.b16 %v888, %v881
    %v1260 = vpack.c.b16 %v889, %v882
    %v1261 = vpack.c.b16 %v890, %v883
    %v1262 = vpack.c.b16 %v898, %v891
    %v1263 = vpack.c.b16 %v899, %v892
    %v1264 = vpack.c.b16 %v900, %v893
    %v1265 = vpack.c.b16 %v901, %v894
    %v1266 = vpack.c.b16 %v902, %v895
    %v1267 = vpack.c.b16 %v903, %v896
    %v1268 = vpack.c.b16 %v904, %v897
    %v1269 = vpack.c.b16 %v912, %v905
    %v1270 = vpack.c.b16 %v913, %v906
    %v1271 = vpack.c.b16 %v914, %v907
    %v1272 = vpack.c.b16 %v915, %v908
    %v1273 = vpack.c.b16 %v916, %v909
    %v1274 = vpack.c.b16 %v917, %v910
    %v1275 = vpack.c.b16 %v918, %v911
    %v1276 = vpack.c.b16 %v926, %v919
    %v1277 = vpack.c.b16 %v927, %v920
    %v1278 = vpack.c.b16 %v928, %v921
    %v1279 = vpack.c.b16 %v929, %v922
    %v1280 = vpack.c.b16 %v930, %v923
    %v1281 = vpack.c.b16 %v931, %v924
    %v1282 = vpack.c.b16 %v932, %v925
    %v1283 = vpack.c.b16 %v940, %v933
    %v1284 = vpack.c.b16 %v941, %v934
    %v1285 = vpack.c.b16 %v942, %v935
    %v1286 = vpack.c.b16 %v943, %v936
    %v1287 = vpack.c.b16 %v944, %v937
    %v1288 = vpack.c.b16 %v945, %v938
    %v1289 = vpack.c.b16 %v946, %v939
    %v1290 = vpack.c.b16 %v954, %v947
    %v1291 = vpack.c.b16 %v955, %v948
    %v1292 = vpack.c.b16 %v956, %v949
    %v1293 = vpack.c.b16 %v957, %v950
    %v1294 = vpack.c.b16 %v958, %v951
    %v1295 = vpack.c.b16 %v959, %v952
    %v1296 = vpack.c.b16 %v960, %v953
    %v1297 = vpack.c.b16 %v968, %v961
    %v1298 = vpack.c.b16 %v969, %v962
    %v1299 = vpack.c.b16 %v970, %v963
    %v1300 = vpack.c.b16 %v971, %v964
    %v1301 = vpack.c.b16 %v972, %v965
    %v1302 = vpack.c.b16 %v973, %v966
    %v1303 = vpack.c.b16 %v974, %v967
    %v1304 = vpack.c.b16 %v982, %v975
    %v1305 = vpack.c.b16 %v983, %v976
    %v1306 = vpack.c.b16 %v984, %v977
    %v1307 = vpack.c.b16 %v985, %v978
    %v1308 = vpack.c.b16 %v986, %v979
    %v1309 = vpack.c.b16 %v987, %v980
    %v1310 = vpack.c.b16 %v988, %v981
    %v1311 = vpack.c.b16 %v996, %v989
    %v1312 = vpack.c.b16 %v997, %v990
    %v1313 = vpack.c.b16 %v998, %v991
    %v1314 = vpack.c.b16 %v999, %v992
    %v1315 = vpack.c.b16 %v1000, %v993
    %v1316 = vpack.c.b16 %v1001, %v994
    %v1317 = vpack.c.b16 %v1002, %v995
    %v1318 = vpack.c.b16 %v1010, %v1003
    %v1319 = vpack.c.b16 %v1011, %v1004
    %v1320 = vpack.c.b16 %v1012, %v1005
    %v1321 = vpack.c.b16 %v1013, %v1006
    %v1322 = vpack.c.b16 %v1014, %v1007
    %v1323 = vpack.c.b16 %v1015, %v1008
    %v1324 = vpack.c.b16 %v1016, %v1009
    %v1325 = vpack.c.b16 %v1024, %v1017
    %v1326 = vpack.c.b16 %v1025, %v1018
    %v1327 = vpack.c.b16 %v1026, %v1019
    %v1328 = vpack.c.b16 %v1027, %v1020
    %v1329 = vpack.c.b16 %v1028, %v1021
    %v1330 = vpack.c.b16 %v1029, %v1022
    %v1331 = vpack.c.b16 %v1030, %v1023
    %v1332 = vpack.c.b16 %v1038, %v1031
    %v1333 = vpack.c.b16 %v1039, %v1032
    %v1334 = vpack.c.b16 %v1040, %v1033
    %v1335 = vpack.c.b16 %v1041, %v1034
    %v1336 = vpack.c.b16 %v1042, %v1035
    %v1337 = vpack.c.b16 %v1043, %v1036
    %v1338 = vpack.c.b16 %v1044, %v1037
    %v1339 = vpack.c.b16 %v1052, %v1045
    %v1340 = vpack.c.b16 %v1053, %v1046
    %v1341 = vpack.c.b16 %v1054, %v1047
    %v1342 = vpack.c.b16 %v1055, %v1048
    %v1343 = vpack.c.b16 %v1056, %v1049
    %v1344 = vpack.c.b16 %v1057, %v1050
    %v1345 = vpack.c.b16 %v1058, %v1051
    %v1346 = vpack.c.b16 %v1066, %v1059
    %v1347 = vpack.c.b16 %v1067, %v1060
    %v1348 = vpack.c.b16 %v1068, %v1061
    %v1349 = vpack.c.b16 %v1069, %v1062
    %v1350 = vpack.c.b16 %v1070, %v1063
    %v1351 = vpack.c.b16 %v1071, %v1064
    %v1352 = vpack.c.b16 %v1072, %v1065
    %v1353 = vpack.c.b16 %v1080, %v1073
    %v1354 = vpack.c.b16 %v1081, %v1074
    %v1355 = vpack.c.b16 %v1082, %v1075
    %v1356 = vpack.c.b16 %v1083, %v1076
    %v1357 = vpack.c.b16 %v1084, %v1077
    %v1358 = vpack.c.b16 %v1085, %v1078
    %v1359 = vpack.c.b16 %v1086, %v1079
    %v1360 = vpack.c.b16 %v1094, %v1087
    %v1361 = vpack.c.b16 %v1095, %v1088
    %v1362 = vpack.c.b16 %v1096, %v1089
    %v1363 = vpack.c.b16 %v1097, %v1090
    %v1364 = vpack.c.b16 %v1098, %v1091
    %v1365 = vpack.c.b16 %v1099, %v1092
    %v1366 = vpack.c.b16 %v1100, %v1093
    %v1367 = vpack.c.b16 %v1108, %v1101
    %v1368 = vpack.c.b16 %v1109, %v1102
    %v1369 = vpack.c.b16 %v1110, %v1103
    %v1370 = vpack.c.b16 %v1111, %v1104
    %v1371 = vpack.c.b16 %v1112, %v1105
    %v1372 = vpack.c.b16 %v1113, %v1106
    %v1373 = vpack.c.b16 %v1114, %v1107
    %v1374 = vpack.c.b16 %v1122, %v1115
    %v1375 = vpack.c.b16 %v1123, %v1116
    %v1376 = vpack.c.b16 %v1124, %v1117
    %v1377 = vpack.c.b16 %v1125, %v1118
    %v1378 = vpack.c.b16 %v1126, %v1119
    %v1379 = vpack.c.b16 %v1127, %v1120
    %v1380 = vpack.c.b16 %v1128, %v1121
    %v1381 = vpack.c.b16 %v1136, %v1129
    %v1382 = vpack.c.b16 %v1137, %v1130
    %v1383 = vpack.c.b16 %v1138, %v1131
    %v1384 = vpack.c.b16 %v1139, %v1132
    %v1385 = vpack.c.b16 %v1140, %v1133
    %v1386 = vpack.c.b16 %v1141, %v1134
    %v1387 = vpack.c.b16 %v1142, %v1135
    %v1388 = vpack.c.b16 %v1150, %v1143
    %v1389 = vpack.c.b16 %v1151, %v1144
    %v1390 = vpack.c.b16 %v1152, %v1145
    %v1391 = vpack.c.b16 %v1153, %v1146
    %v1392 = vpack.c.b16 %v1154, %v1147
    %v1393 = vpack.c.b16 %v1155, %v1148
    %v1394 = vpack.c.b16 %v1156, %v1149
    %v1395 = vpack.c.b16 %v1164, %v1157
    %v1396 = vpack.c.b16 %v1165, %v1158
    %v1397 = vpack.c.b16 %v1166, %v1159
    %v1398 = vpack.c.b16 %v1167, %v1160
    %v1399 = vpack.c.b16 %v1168, %v1161
    %v1400 = vpack.c.b16 %v1169, %v1162
    %v1401 = vpack.c.b16 %v1170, %v1163
    %v1402 = vpack.c.b16 %v1178, %v1171
    %v1403 = vpack.c.b16 %v1179, %v1172
    %v1404 = vpack.c.b16 %v1180, %v1173
    %v1405 = vpack.c.b16 %v1181, %v1174
    %v1406 = vpack.c.b16 %v1182, %v1175
    %v1407 = vpack.c.b16 %v1183, %v1176
    %v1408 = vpack.c.b16 %v1184, %v1177
    %1633 = vmatprep.subr.bf16.mxu0 %v1186
    %1634 = vmatpush1.bf16.msra.mxu0 %v1185
    %1635 = vmatprep.subr.bf16.mxu0 %v1193
    %1636 = vmatpush1.bf16.msra.mxu0 %v1192
    %1637 = vmatprep.subr.bf16.mxu0 %v1200
    %1638 = vmatpush1.bf16.msra.mxu0 %v1199
    %1639 = vmatprep.subr.bf16.mxu0 %v1207
    %1640 = vmatpush1.bf16.msra.mxu0 %v1206
    %1641 = vmatprep.subr.bf16.mxu0 %v1214
    %1642 = vmatpush1.bf16.msra.mxu0 %v1213
    %1643 = vmatprep.subr.bf16.mxu0 %v1221
    %1644 = vmatpush1.bf16.msra.mxu0 %v1220
    %1645 = vmatprep.subr.bf16.mxu0 %v1228
    %1646 = vmatpush1.bf16.msra.mxu0 %v1227
    %1647 = vmatprep.subr.bf16.mxu0 %v1235
    %1648 = vmatpush1.bf16.msra.mxu0 %v1234
    %1649 = vmatprep.subr.bf16.mxu0 %v1242
    %1650 = vmatpush1.bf16.msra.mxu0 %v1241
    %1651 = vmatprep.subr.bf16.mxu0 %v1249
    %1652 = vmatpush1.bf16.msra.mxu0 %v1248
    %1653 = vmatprep.subr.bf16.mxu0 %v1256
    %1654 = vmatpush1.bf16.msra.mxu0 %v1255
    %1655 = vmatprep.subr.bf16.mxu0 %v1263
    %1656 = vmatpush1.bf16.msra.mxu0 %v1262
    %1657 = vmatprep.subr.bf16.mxu0 %v1270
    %1658 = vmatpush1.bf16.msra.mxu0 %v1269
    %1659 = vmatprep.subr.bf16.mxu0 %v1277
    %1660 = vmatpush1.bf16.msra.mxu0 %v1276
    %1661 = vmatprep.subr.bf16.mxu0 %v1284
    %1662 = vmatpush1.bf16.msra.mxu0 %v1283
    %1663 = vmatprep.subr.bf16.mxu0 %v1291
    %1664 = vmatpush1.bf16.msra.mxu0 %v1290
    %1665 = vmatprep.mubr.bf16.mxu0 %v185
    %1666 = vmatmul.mubr.bf16.gmra.mrb[0].mxu0 %v184
    %v1667 = vpop.f32.mrb[0].mxu0
    %v1668 = vadd.f32 %v449, %v1667
    %v1669 = vpop.f32.mrb[0].mxu0
    %v1670 = vadd.f32 %v453, %v1669
    %v1671 = vpop.f32.mrb[0].mxu0
    %v1672 = vadd.f32 %v449, %v1671
    %v1673 = vpop.f32.mrb[0].mxu0
    %v1674 = vadd.f32 %v453, %v1673
    %1675 = vdwg.mxu0
    %1676 = vmatprep.subr.bf16.mxu0 %v1298
    %1677 = vmatpush1.bf16.msra.mxu0 %v1297
    %1678 = vmatprep.subr.bf16.mxu0 %v1305
    %1679 = vmatpush1.bf16.msra.mxu0 %v1304
    %1680 = vmatprep.subr.bf16.mxu0 %v1312
    %1681 = vmatpush1.bf16.msra.mxu0 %v1311
    %1682 = vmatprep.subr.bf16.mxu0 %v1319
    %1683 = vmatpush1.bf16.msra.mxu0 %v1318
    %1684 = vmatprep.subr.bf16.mxu0 %v1326
    %1685 = vmatpush1.bf16.msra.mxu0 %v1325
    %1686 = vmatprep.subr.bf16.mxu0 %v1333
    %1687 = vmatpush1.bf16.msra.mxu0 %v1332
    %1688 = vmatprep.subr.bf16.mxu0 %v1340
    %1689 = vmatpush1.bf16.msra.mxu0 %v1339
    %1690 = vmatprep.subr.bf16.mxu0 %v1347
    %1691 = vmatpush1.bf16.msra.mxu0 %v1346
    %1692 = vmatprep.subr.bf16.mxu0 %v1354
    %1693 = vmatpush1.bf16.msra.mxu0 %v1353
    %1694 = vmatprep.subr.bf16.mxu0 %v1361
    %1695 = vmatpush1.bf16.msra.mxu0 %v1360
    %1696 = vmatprep.subr.bf16.mxu0 %v1368
    %1697 = vmatpush1.bf16.msra.mxu0 %v1367
    %1698 = vmatprep.subr.bf16.mxu0 %v1375
    %1699 = vmatpush1.bf16.msra.mxu0 %v1374
    %1700 = vmatprep.subr.bf16.mxu0 %v1382
    %1701 = vmatpush1.bf16.msra.mxu0 %v1381
    %1702 = vmatprep.subr.bf16.mxu0 %v1389
    %1703 = vmatpush1.bf16.msra.mxu0 %v1388
    %1704 = vmatprep.subr.bf16.mxu0 %v1396
    %1705 = vmatpush1.bf16.msra.mxu0 %v1395
    %1706 = vmatprep.subr.bf16.mxu0 %v1403
    %1707 = vmatpush1.bf16.msra.mxu0 %v1402
    %1708 = vmatprep.mubr.bf16.mxu0 %v187
    %1709 = vmatmul.mubr.bf16.gmra.mrb[0].mxu0 %v186
    %v1710 = vpop.f32.mrb[0].mxu0
    %v1711 = vadd.f32 %v1668, %v1710
    %v1712 = vpop.f32.mrb[0].mxu0
    %v1713 = vadd.f32 %v1670, %v1712
    %v1714 = vpop.f32.mrb[0].mxu0
    %v1715 = vadd.f32 %v1672, %v1714
    %v1716 = vpop.f32.mrb[0].mxu0
    %v1717 = vadd.f32 %v1674, %v1716
    %1718 = vdwg.mxu0
    %1719 = vmatprep.subr.bf16.mxu0 %v1188
    %1720 = vmatpush1.bf16.msra.mxu0 %v1187
    %1721 = vmatprep.subr.bf16.mxu0 %v1195
    %1722 = vmatpush1.bf16.msra.mxu0 %v1194
    %1723 = vmatprep.subr.bf16.mxu0 %v1202
    %1724 = vmatpush1.bf16.msra.mxu0 %v1201
    %1725 = vmatprep.subr.bf16.mxu0 %v1209
    %1726 = vmatpush1.bf16.msra.mxu0 %v1208
    %1727 = vmatprep.subr.bf16.mxu0 %v1216
    %1728 = vmatpush1.bf16.msra.mxu0 %v1215
    %1729 = vmatprep.subr.bf16.mxu0 %v1223
    %1730 = vmatpush1.bf16.msra.mxu0 %v1222
    %1731 = vmatprep.subr.bf16.mxu0 %v1230
    %1732 = vmatpush1.bf16.msra.mxu0 %v1229
    %1733 = vmatprep.subr.bf16.mxu0 %v1237
    %1734 = vmatpush1.bf16.msra.mxu0 %v1236
    %1735 = vmatprep.subr.bf16.mxu0 %v1244
    %1736 = vmatpush1.bf16.msra.mxu0 %v1243
    %1737 = vmatprep.subr.bf16.mxu0 %v1251
    %1738 = vmatpush1.bf16.msra.mxu0 %v1250
    %1739 = vmatprep.subr.bf16.mxu0 %v1258
    %1740 = vmatpush1.bf16.msra.mxu0 %v1257
    %1741 = vmatprep.subr.bf16.mxu0 %v1265
    %1742 = vmatpush1.bf16.msra.mxu0 %v1264
    %1743 = vmatprep.subr.bf16.mxu0 %v1272
    %1744 = vmatpush1.bf16.msra.mxu0 %v1271
    %1745 = vmatprep.subr.bf16.mxu0 %v1279
    %1746 = vmatpush1.bf16.msra.mxu0 %v1278
    %1747 = vmatprep.subr.bf16.mxu0 %v1286
    %1748 = vmatpush1.bf16.msra.mxu0 %v1285
    %1749 = vmatprep.subr.bf16.mxu0 %v1293
    %1750 = vmatpush1.bf16.msra.mxu0 %v1292
    %1751 = vmatprep.mubr.bf16.mxu0 %v185
    %1752 = vmatmul.mubr.bf16.gmra.mrb[0].mxu0 %v184
    %v1753 = vpop.f32.mrb[0].mxu0
    %v1754 = vadd.f32 %v457, %v1753
    %v1755 = vpop.f32.mrb[0].mxu0
    %v1756 = vadd.f32 %v461, %v1755
    %v1757 = vpop.f32.mrb[0].mxu0
    %v1758 = vadd.f32 %v457, %v1757
    %v1759 = vpop.f32.mrb[0].mxu0
    %v1760 = vadd.f32 %v461, %v1759
    %1761 = vdwg.mxu0
    %1762 = vmatprep.subr.bf16.mxu0 %v1300
    %1763 = vmatpush1.bf16.msra.mxu0 %v1299
    %1764 = vmatprep.subr.bf16.mxu0 %v1307
    %1765 = vmatpush1.bf16.msra.mxu0 %v1306
    %1766 = vmatprep.subr.bf16.mxu0 %v1314
    %1767 = vmatpush1.bf16.msra.mxu0 %v1313
    %1768 = vmatprep.subr.bf16.mxu0 %v1321
    %1769 = vmatpush1.bf16.msra.mxu0 %v1320
    %1770 = vmatprep.subr.bf16.mxu0 %v1328
    %1771 = vmatpush1.bf16.msra.mxu0 %v1327
    %1772 = vmatprep.subr.bf16.mxu0 %v1335
    %1773 = vmatpush1.bf16.msra.mxu0 %v1334
    %1774 = vmatprep.subr.bf16.mxu0 %v1342
    %1775 = vmatpush1.bf16.msra.mxu0 %v1341
    %1776 = vmatprep.subr.bf16.mxu0 %v1349
    %1777 = vmatpush1.bf16.msra.mxu0 %v1348
    %1778 = vmatprep.subr.bf16.mxu0 %v1356
    %1779 = vmatpush1.bf16.msra.mxu0 %v1355
    %1780 = vmatprep.subr.bf16.mxu0 %v1363
    %1781 = vmatpush1.bf16.msra.mxu0 %v1362
    %1782 = vmatprep.subr.bf16.mxu0 %v1370
    %1783 = vmatpush1.bf16.msra.mxu0 %v1369
    %1784 = vmatprep.subr.bf16.mxu0 %v1377
    %1785 = vmatpush1.bf16.msra.mxu0 %v1376
    %1786 = vmatprep.subr.bf16.mxu0 %v1384
    %1787 = vmatpush1.bf16.msra.mxu0 %v1383
    %1788 = vmatprep.subr.bf16.mxu0 %v1391
    %1789 = vmatpush1.bf16.msra.mxu0 %v1390
    %1790 = vmatprep.subr.bf16.mxu0 %v1398
    %1791 = vmatpush1.bf16.msra.mxu0 %v1397
    %1792 = vmatprep.subr.bf16.mxu0 %v1405
    %1793 = vmatpush1.bf16.msra.mxu0 %v1404
    %1794 = vmatprep.mubr.bf16.mxu0 %v187
    %1795 = vmatmul.mubr.bf16.gmra.mrb[0].mxu0 %v186
    %v1796 = vpop.f32.mrb[0].mxu0
    %v1797 = vadd.f32 %v1754, %v1796
    %v1798 = vpop.f32.mrb[0].mxu0
    %v1799 = vadd.f32 %v1756, %v1798
    %v1800 = vpop.f32.mrb[0].mxu0
    %v1801 = vadd.f32 %v1758, %v1800
    %v1802 = vpop.f32.mrb[0].mxu0
    %v1803 = vadd.f32 %v1760, %v1802
    %1804 = vdwg.mxu0
    %1805 = vmatprep.subr.bf16.mxu0 %v1190
    %1806 = vmatpush1.bf16.msra.mxu0 %v1189
    %1807 = vmatprep.subr.bf16.mxu0 %v1197
    %1808 = vmatpush1.bf16.msra.mxu0 %v1196
    %1809 = vmatprep.subr.bf16.mxu0 %v1204
    %1810 = vmatpush1.bf16.msra.mxu0 %v1203
    %1811 = vmatprep.subr.bf16.mxu0 %v1211
    %1812 = vmatpush1.bf16.msra.mxu0 %v1210
    %1813 = vmatprep.subr.bf16.mxu0 %v1218
    %1814 = vmatpush1.bf16.msra.mxu0 %v1217
    %1815 = vmatprep.subr.bf16.mxu0 %v1225
    %1816 = vmatpush1.bf16.msra.mxu0 %v1224
    %1817 = vmatprep.subr.bf16.mxu0 %v1232
    %1818 = vmatpush1.bf16.msra.mxu0 %v1231
    %1819 = vmatprep.subr.bf16.mxu0 %v1239
    %1820 = vmatpush1.bf16.msra.mxu0 %v1238
    %1821 = vmatprep.subr.bf16.mxu0 %v1246
    %1822 = vmatpush1.bf16.msra.mxu0 %v1245
    %1823 = vmatprep.subr.bf16.mxu0 %v1253
    %1824 = vmatpush1.bf16.msra.mxu0 %v1252
    %1825 = vmatprep.subr.bf16.mxu0 %v1260
    %1826 = vmatpush1.bf16.msra.mxu0 %v1259
    %1827 = vmatprep.subr.bf16.mxu0 %v1267
    %1828 = vmatpush1.bf16.msra.mxu0 %v1266
    %1829 = vmatprep.subr.bf16.mxu0 %v1274
    %1830 = vmatpush1.bf16.msra.mxu0 %v1273
    %1831 = vmatprep.subr.bf16.mxu0 %v1281
    %1832 = vmatpush1.bf16.msra.mxu0 %v1280
    %1833 = vmatprep.subr.bf16.mxu0 %v1288
    %1834 = vmatpush1.bf16.msra.mxu0 %v1287
    %1835 = vmatprep.subr.bf16.mxu0 %v1295
    %1836 = vmatpush1.bf16.msra.mxu0 %v1294
    %1837 = vmatprep.mubr.bf16.mxu0 %v185
    %1838 = vmatmul.mubr.bf16.gmra.mrb[0].mxu0 %v184
    %v1839 = vpop.f32.mrb[0].mxu0
    %v1840 = vadd.f32 %v465, %v1839
    %v1841 = vpop.f32.mrb[0].mxu0
    %v1842 = vadd.f32 %v469, %v1841
    %v1843 = vpop.f32.mrb[0].mxu0
    %v1844 = vadd.f32 %v465, %v1843
    %v1845 = vpop.f32.mrb[0].mxu0
    %v1846 = vadd.f32 %v469, %v1845
    %1847 = vdwg.mxu0
    %1848 = vmatprep.subr.bf16.mxu0 %v1302
    %1849 = vmatpush1.bf16.msra.mxu0 %v1301
    %1850 = vmatprep.subr.bf16.mxu0 %v1309
    %1851 = vmatpush1.bf16.msra.mxu0 %v1308
    %1852 = vmatprep.subr.bf16.mxu0 %v1316
    %1853 = vmatpush1.bf16.msra.mxu0 %v1315
    %1854 = vmatprep.subr.bf16.mxu0 %v1323
    %1855 = vmatpush1.bf16.msra.mxu0 %v1322
    %1856 = vmatprep.subr.bf16.mxu0 %v1330
    %1857 = vmatpush1.bf16.msra.mxu0 %v1329
    %1858 = vmatprep.subr.bf16.mxu0 %v1337
    %1859 = vmatpush1.bf16.msra.mxu0 %v1336
    %1860 = vmatprep.subr.bf16.mxu0 %v1344
    %1861 = vmatpush1.bf16.msra.mxu0 %v1343
    %1862 = vmatprep.subr.bf16.mxu0 %v1351
    %1863 = vmatpush1.bf16.msra.mxu0 %v1350
    %1864 = vmatprep.subr.bf16.mxu0 %v1358
    %1865 = vmatpush1.bf16.msra.mxu0 %v1357
    %1866 = vmatprep.subr.bf16.mxu0 %v1365
    %1867 = vmatpush1.bf16.msra.mxu0 %v1364
    %1868 = vmatprep.subr.bf16.mxu0 %v1372
    %1869 = vmatpush1.bf16.msra.mxu0 %v1371
    %1870 = vmatprep.subr.bf16.mxu0 %v1379
    %1871 = vmatpush1.bf16.msra.mxu0 %v1378
    %1872 = vmatprep.subr.bf16.mxu0 %v1386
    %1873 = vmatpush1.bf16.msra.mxu0 %v1385
    %1874 = vmatprep.subr.bf16.mxu0 %v1393
    %1875 = vmatpush1.bf16.msra.mxu0 %v1392
    %1876 = vmatprep.subr.bf16.mxu0 %v1400
    %1877 = vmatpush1.bf16.msra.mxu0 %v1399
    %1878 = vmatprep.subr.bf16.mxu0 %v1407
    %1879 = vmatpush1.bf16.msra.mxu0 %v1406
    %1880 = vmatprep.mubr.bf16.mxu0 %v187
    %1881 = vmatmul.mubr.bf16.gmra.mrb[0].mxu0 %v186
    %v1882 = vpop.f32.mrb[0].mxu0
    %v1883 = vadd.f32 %v1840, %v1882
    %v1884 = vpop.f32.mrb[0].mxu0
    %v1885 = vadd.f32 %v1842, %v1884
    %v1886 = vpop.f32.mrb[0].mxu0
    %v1887 = vadd.f32 %v1844, %v1886
    %v1888 = vpop.f32.mrb[0].mxu0
    %v1889 = vadd.f32 %v1846, %v1888
    %1890 = vdwg.mxu0
    %1891 = vmatprep.subr.bf16.mxu0 0
    %1892 = vmatpush1.bf16.msra.mxu0 %v1191
    %1893 = vmatprep.subr.bf16.mxu0 0
    %1894 = vmatpush1.bf16.msra.mxu0 %v1198
    %1895 = vmatprep.subr.bf16.mxu0 0
    %1896 = vmatpush1.bf16.msra.mxu0 %v1205
    %1897 = vmatprep.subr.bf16.mxu0 0
    %1898 = vmatpush1.bf16.msra.mxu0 %v1212
    %1899 = vmatprep.subr.bf16.mxu0 0
    %1900 = vmatpush1.bf16.msra.mxu0 %v1219
    %1901 = vmatprep.subr.bf16.mxu0 0
    %1902 = vmatpush1.bf16.msra.mxu0 %v1226
    %1903 = vmatprep.subr.bf16.mxu0 0
    %1904 = vmatpush1.bf16.msra.mxu0 %v1233
    %1905 = vmatprep.subr.bf16.mxu0 0
    %1906 = vmatpush1.bf16.msra.mxu0 %v1240
    %1907 = vmatprep.subr.bf16.mxu0 0
    %1908 = vmatpush1.bf16.msra.mxu0 %v1247
    %1909 = vmatprep.subr.bf16.mxu0 0
    %1910 = vmatpush1.bf16.msra.mxu0 %v1254
    %1911 = vmatprep.subr.bf16.mxu0 0
    %1912 = vmatpush1.bf16.msra.mxu0 %v1261
    %1913 = vmatprep.subr.bf16.mxu0 0
    %1914 = vmatpush1.bf16.msra.mxu0 %v1268
    %1915 = vmatprep.subr.bf16.mxu0 0
    %1916 = vmatpush1.bf16.msra.mxu0 %v1275
    %1917 = vmatprep.subr.bf16.mxu0 0
    %1918 = vmatpush1.bf16.msra.mxu0 %v1282
    %1919 = vmatprep.subr.bf16.mxu0 0
    %1920 = vmatpush1.bf16.msra.mxu0 %v1289
    %1921 = vmatprep.subr.bf16.mxu0 0
    %1922 = vmatpush1.bf16.msra.mxu0 %v1296
    %1923 = vmatprep.mubr.bf16.mxu0 %v185
    %1924 = vmatmul.mubr.bf16.gmra.mrb[0].mxu0 %v184
    %v1925 = vpop.f32.mrb[0].mxu0
    %v1926 = vadd.f32 %v473, %v1925
    %v1927 = vpop.f32.mrb[0].mxu0
    %v1928 = vpop.f32.mrb[0].mxu0
    %v1929 = vadd.f32 %v473, %v1928
    %v1930 = vpop.f32.mrb[0].mxu0
    %1931 = vdwg.mxu0
    %1932 = vmatprep.subr.bf16.mxu0 0
    %1933 = vmatpush1.bf16.msra.mxu0 %v1303
    %1934 = vmatprep.subr.bf16.mxu0 0
    %1935 = vmatpush1.bf16.msra.mxu0 %v1310
    %1936 = vmatprep.subr.bf16.mxu0 0
    %1937 = vmatpush1.bf16.msra.mxu0 %v1317
    %1938 = vmatprep.subr.bf16.mxu0 0
    %1939 = vmatpush1.bf16.msra.mxu0 %v1324
    %1940 = vmatprep.subr.bf16.mxu0 0
    %1941 = vmatpush1.bf16.msra.mxu0 %v1331
    %1942 = vmatprep.subr.bf16.mxu0 0
    %1943 = vmatpush1.bf16.msra.mxu0 %v1338
    %1944 = vmatprep.subr.bf16.mxu0 0
    %1945 = vmatpush1.bf16.msra.mxu0 %v1345
    %1946 = vmatprep.subr.bf16.mxu0 0
    %1947 = vmatpush1.bf16.msra.mxu0 %v1352
    %1948 = vmatprep.subr.bf16.mxu0 0
    %1949 = vmatpush1.bf16.msra.mxu0 %v1359
    %1950 = vmatprep.subr.bf16.mxu0 0
    %1951 = vmatpush1.bf16.msra.mxu0 %v1366
    %1952 = vmatprep.subr.bf16.mxu0 0
    %1953 = vmatpush1.bf16.msra.mxu0 %v1373
    %1954 = vmatprep.subr.bf16.mxu0 0
    %1955 = vmatpush1.bf16.msra.mxu0 %v1380
    %1956 = vmatprep.subr.bf16.mxu0 0
    %1957 = vmatpush1.bf16.msra.mxu0 %v1387
    %1958 = vmatprep.subr.bf16.mxu0 0
    %1959 = vmatpush1.bf16.msra.mxu0 %v1394
    %1960 = vmatprep.subr.bf16.mxu0 0
    %1961 = vmatpush1.bf16.msra.mxu0 %v1401
    %1962 = vmatprep.subr.bf16.mxu0 0
    %1963 = vmatpush1.bf16.msra.mxu0 %v1408
    %1964 = vmatprep.mubr.bf16.mxu0 %v187
    %1965 = vmatmul.mubr.bf16.gmra.mrb[0].mxu0 %v186
    %v1966 = vpop.f32.mrb[0].mxu0
    %v1967 = vadd.f32 %v1926, %v1966
    %v1968 = vpop.f32.mrb[0].mxu0
    %v1969 = vpop.f32.mrb[0].mxu0
    %v1970 = vadd.f32 %v1929, %v1969
    %v1971 = vpop.f32.mrb[0].mxu0
    %1972 = vdwg.mxu0
    %v1973 = vsub.f32 0.0, %v1711
    %v1974 = vsub.f32 0.0, %v1713
    %v1975 = vsub.f32 0.0, %v1797
    %v1976 = vsub.f32 0.0, %v1799
    %v1977 = vsub.f32 0.0, %v1883
    %v1978 = vsub.f32 0.0, %v1885
    %v1979 = vsub.f32 0.0, %v1967
    %v1980 = vsub.f32 0.0, %v1715
    %v1981 = vsub.f32 0.0, %v1717
    %v1982 = vsub.f32 0.0, %v1801
    %v1983 = vsub.f32 0.0, %v1803
    %v1984 = vsub.f32 0.0, %v1887
    %v1985 = vsub.f32 0.0, %v1889
    %v1986 = vsub.f32 0.0, %v1970
    %v1987 = vmul.f32 %v1973, 1.442695
    %v1988 = vpow.pop %v1987
    %v1989 = vmul.f32 %v1974, 1.442695
    %v1990 = vpow.pop %v1989
    %v1991 = vmul.f32 %v1975, 1.442695
    %v1992 = vpow.pop %v1991
    %v1993 = vmul.f32 %v1976, 1.442695
    %v1994 = vpow.pop %v1993
    %v1995 = vmul.f32 %v1977, 1.442695
    %v1996 = vpow.pop %v1995
    %v1997 = vmul.f32 %v1978, 1.442695
    %v1998 = vpow.pop %v1997
    %v1999 = vmul.f32 %v1979, 1.442695
    %v2000 = vpow.pop %v1999
    %v2001 = vmul.f32 %v1980, 1.442695
    %v2002 = vpow.pop %v2001
    %v2003 = vmul.f32 %v1981, 1.442695
    %v2004 = vpow.pop %v2003
    %v2005 = vmul.f32 %v1982, 1.442695
    %v2006 = vpow.pop %v2005
    %v2007 = vmul.f32 %v1983, 1.442695
    %v2008 = vpow.pop %v2007
    %v2009 = vmul.f32 %v1984, 1.442695
    %v2010 = vpow.pop %v2009
    %v2011 = vmul.f32 %v1985, 1.442695
    %v2012 = vpow.pop %v2011
    %v2013 = vmul.f32 %v1986, 1.442695
    %v2014 = vpow.pop %v2013
    %v2015 = vadd.f32 %v1988, 1.0
    %v2016 = vadd.f32 %v1990, 1.0
    %v2017 = vadd.f32 %v1992, 1.0
    %v2018 = vadd.f32 %v1994, 1.0
    %v2019 = vadd.f32 %v1996, 1.0
    %v2020 = vadd.f32 %v1998, 1.0
    %v2021 = vadd.f32 %v2000, 1.0
    %v2022 = vadd.f32 %v2002, 1.0
    %v2023 = vadd.f32 %v2004, 1.0
    %v2024 = vadd.f32 %v2006, 1.0
    %v2025 = vadd.f32 %v2008, 1.0
    %v2026 = vadd.f32 %v2010, 1.0
    %v2027 = vadd.f32 %v2012, 1.0
    %v2028 = vadd.f32 %v2014, 1.0
    %v2029 = vrcp.pop %v2015
    %v2030 = vrcp.pop %v2016
    %v2031 = vrcp.pop %v2017
    %v2032 = vrcp.pop %v2018
    %v2033 = vrcp.pop %v2019
    %v2034 = vrcp.pop %v2020
    %v2035 = vrcp.pop %v2021
    %v2036 = vrcp.pop %v2022
    %v2037 = vrcp.pop %v2023
    %v2038 = vrcp.pop %v2024
    %v2039 = vrcp.pop %v2025
    %v2040 = vrcp.pop %v2026
    %v2041 = vrcp.pop %v2027
    %v2042 = vrcp.pop %v2028
    %2043 = vst [vmem:[#allocation5] sm:$0xff] %v2029
    %2044 = vst [vmem:[#allocation5 + $0x8] sm:$0xff] %v2030
    %2045 = vst [vmem:[#allocation5 + $0x10] sm:$0xff] %v2031
    %2046 = vst [vmem:[#allocation5 + $0x18] sm:$0xff] %v2032
    %2047 = vst [vmem:[#allocation5 + $0x20] sm:$0xff] %v2033
    %2048 = vst [vmem:[#allocation5 + $0x28] sm:$0xff] %v2034
    %vm2049 = vcmask 130048
    %2050 = vst.msk [vmem:[#allocation5 + $0x30] sm:$0xff] %vm2049, %v2035
    %2051 = vst [vmem:[#allocation5 + $0x38] sm:$0xff] %v2036
    %2052 = vst [vmem:[#allocation5 + $0x40] sm:$0xff] %v2037
    %2053 = vst [vmem:[#allocation5 + $0x48] sm:$0xff] %v2038
    %2054 = vst [vmem:[#allocation5 + $0x50] sm:$0xff] %v2039
    %2055 = vst [vmem:[#allocation5 + $0x58] sm:$0xff] %v2040
    %2056 = vst [vmem:[#allocation5 + $0x60] sm:$0xff] %v2041
    %2057 = vst.msk [vmem:[#allocation5 + $0x68] sm:$0xff] %vm2049, %v2042
    // Predicated region
    $region26: #{tpu_custom_call.1} parent=1 // pred_check
      _
    $region27: #{tpu_custom_call.1} parent=1 // pred_check_branch
      %2059 = sbr.rel (0) target = $region29
    $region28: #{tpu_custom_call.1} parent=1 // pred_region
      %s2061 = ssub.s32 1792, 1792
      %2062 = vsyncadd [#allocation4], %s2061
      %s2063 = sshll.u32 [#allocation5], 4
      %s2064 = int_to_ptr.vmem [resolvable:$true] %s2063
      %2069 = dma.vmem_to_hbm [thread:$0]  %s2064, 1792, %s5, [#allocation4], 896, 896, 56
    $region29: #{tpu_custom_call.1} parent=1 // pred_fallthru
      _
    // Predicated region
    $region30: #{tpu_custom_call.1} parent=1 // pred_check
      _
    $region31: #{tpu_custom_call.1} parent=1 // pred_check_branch
      %2071 = sbr.rel (0) target = $region33
    $region32: #{tpu_custom_call.1} parent=1 // pred_region
      %2072 = dma.done [#allocation4], 1792
    $region33: #{tpu_custom_call.1} parent=1 // pred_fallthru
      _
    %2073 = vsyncpa [#allocation3], 1
    %2074 = vsyncpa [#allocation4], 1

</llo_original>
